<compile_context>
chip_gen: v5e
topology: v5e:2x2
jax: 0.10.0
libtpu: 0.0.40
codegen_flags: <defaults>
</compile_context>

<pallas_src>
import functools

import jax
import jax.numpy as jnp
import numpy as np
from jax.experimental import pallas as pl
from jax.experimental.pallas import tpu as pltpu


def _sequence_kernel(x2d_ref, wih0_ref, bih0_ref,
                     w0cat_ref, b0cat_ref,
                     w1cat_ref, b1cat_ref,
                     out_ref,
                     *, seq_len, batch, hidden):
    T, B, H = seq_len, batch, hidden
    H2, H3 = 2 * H, 3 * H

    # --- prologue: layer-0 input projections for ALL timesteps (off the serial
    # chain): (T*B, Din) @ (Din, 3H) + b_ih0  -> (T*B, 3H)
    gi0_all = jnp.dot(x2d_ref[...], wih0_ref[...],
                      preferred_element_type=jnp.float32) + bih0_ref[...]

    w0cat = w0cat_ref[...]                                   # (H, 6H)       = [W_hh0 | W_ih1]
    w1cat = w1cat_ref[...]                                   # (H, 3H+Dout)  = [W_hh1 | W_out]
    # Hoist bias broadcasts out of the time loop (JAX does not CSE them).
    b0cat = jnp.broadcast_to(b0cat_ref[...], (B, w0cat.shape[1]))
    b1cat = jnp.broadcast_to(b1cat_ref[...], (B, w1cat.shape[1]))

    def gru_cell(gi, gh, h):
        # PyTorch GRUCell gate order (r, z, n); one EUP sigmoid stream for r,z.
        rz = jax.nn.sigmoid(gi[:, :H2] + gh[:, :H2])
        r = rz[:, :H]
        z = rz[:, H:]
        n = jnp.tanh(gi[:, H2:] + r * gh[:, H2:])
        return (1.0 - z) * n + z * h

    # h[i] = zeros(B, H) at the start of forward()  =>  gh = 0 @ W_hh + b_hh = b_hh
    h0 = jnp.zeros((B, H), jnp.float32)
    h1 = jnp.zeros((B, H), jnp.float32)
    gh1 = b1cat[:, :H3]                                       # gh1 for step 0

    # --- recurrence prologue: layer-0 cell at t=0, then its fused matmul.
    h0 = gru_cell(gi0_all[0:B, :], b0cat[:, :H3], h0)         # h0_0
    g0 = jnp.dot(h0, w0cat, preferred_element_type=jnp.float32) + b0cat
    gh0 = g0[:, :H3]                                          # gh0 for step 1
    gi1 = g0[:, H3:]                                          # gi1 for step 0

    # --- steady state (static unroll; all slices are static & sublane-aligned).
    # Loop invariant at iteration t:
    #   h0 = h0_t, h1 = h1_{t-1}, gi1 = gi1_t, gh1 = gh1_t, gh0 = gh0_{t+1}
    for t in range(T - 1):
        # The two cells are mutually independent (layer-1 of step t vs.
        # layer-0 of step t+1), as are their two matmuls below.
        h1_new = gru_cell(gi1, gh1, h1)                                   # h1_t
        h0_new = gru_cell(gi0_all[(t + 1) * B:(t + 2) * B, :], gh0, h0)   # h0_{t+1}
        h1, h0 = h1_new, h0_new

        g1 = jnp.dot(h1, w1cat, preferred_element_type=jnp.float32) + b1cat
        g0 = jnp.dot(h0, w0cat, preferred_element_type=jnp.float32) + b0cat
        gh1 = g1[:, :H3]                                      # gh1_{t+1}
        gh0 = g0[:, :H3]                                      # gh0_{t+2}
        gi1 = g0[:, H3:]                                      # gi1_{t+1}

    # --- epilogue: last layer-1 cell, then the output Linear (fused in w1cat).
    h1 = gru_cell(gi1, gh1, h1)                               # h1_{T-1}
    g1 = jnp.dot(h1, w1cat, preferred_element_type=jnp.float32) + b1cat
    out = g1[:, H3:]                                          # = h1 @ W_out + b_out

    # forward() returns only the last-step output; single store at the end.
    out_ref[...] = out.astype(out_ref.dtype)


def sequence_forward(rnn_input, params, hidden):
    """rnn_input: (T, B, D_in) float32. Returns last-step output (B, D_out)."""
    T, B, Din = rnn_input.shape
    (wih0, whh0, bih0, bhh0,
     wih1, whh1, bih1, bhh1,
     wout, bout) = params
    Dout = wout.shape[1]
    H = hidden

    # Flatten time into the sublane axis for one lane-dense input projection.
    x2d = rnn_input.reshape(T * B, Din)

    # Fuse weights that share the same LHS (concatenate along the lane axis).
    w0cat = jnp.concatenate([whh0, wih1], axis=1)             # (H, 6H)
    b0cat = jnp.concatenate([bhh0, bih1], axis=1)             # (1, 6H)
    w1cat = jnp.concatenate([whh1, wout], axis=1)             # (H, 3H + Dout)
    b1cat = jnp.concatenate([bhh1, bout], axis=1)             # (1, 3H + Dout)

    kernel = functools.partial(_sequence_kernel,
                               seq_len=T, batch=B, hidden=H)

    vmem = pl.BlockSpec(memory_space=pltpu.MemorySpace.VMEM)
    return pl.pallas_call(
        kernel,
        out_shape=jax.ShapeDtypeStruct((B, Dout), jnp.float32),
        in_specs=[vmem] * 7,
        out_specs=pl.BlockSpec(memory_space=pltpu.MemorySpace.VMEM),
        # TODO(synk): if batch grows beyond toy sizes, add a leading "parallel"
        # batch-tile grid axis so both v7x TensorCores get work.
    )(x2d, wih0, bih0, w0cat, b0cat, w1cat, b1cat)


# ---------------------------------------------------------------------------
# Pure-JAX reference mirroring the PyTorch forward loop (for verification).
# ---------------------------------------------------------------------------
def _gru_cell_ref(x, h, wih, whh, bih, bhh, H):
    gi = x @ wih + bih
    gh = h @ whh + bhh
    r = jax.nn.sigmoid(gi[:, :H] + gh[:, :H])
    z = jax.nn.sigmoid(gi[:, H:2 * H] + gh[:, H:2 * H])
    n = jnp.tanh(gi[:, 2 * H:] + r * gh[:, 2 * H:])
    return (1.0 - z) * n + z * h


def _reference_forward(rnn_input, params, hidden):
    (wih0, whh0, bih0, bhh0,
     wih1, whh1, bih1, bhh1,
     wout, bout) = params
    T, B, _ = rnn_input.shape
    h0 = jnp.zeros((B, hidden), jnp.float32)
    h1 = jnp.zeros((B, hidden), jnp.float32)
    out = None
    for t in range(T):
        x_t = rnn_input[t]
        h0 = _gru_cell_ref(x_t, h0, wih0, whh0, bih0, bhh0, hidden)
        h1 = _gru_cell_ref(h0, h1, wih1, whh1, bih1, bhh1, hidden)
        out = h1 @ wout + bout
    return out


if __name__ == "__main__":
    # net_name = "GRU-32H1-32H2": 2 GRU layers of size 32, then Linear(32 -> n_outputs)
    T, B = 8, 8            # seq_len, batch
    D_IN, HIDDEN, D_OUT = 4, 32, 3

    key = jax.random.PRNGKey(0)
    ks = jax.random.split(key, 12)
    s = 0.1

    # weights stored as (in_features, out_features); biases as (1, features)
    wih0 = (s * jax.random.normal(ks[0], (D_IN, 3 * HIDDEN))).astype(jnp.float32)
    whh0 = (s * jax.random.normal(ks[1], (HIDDEN, 3 * HIDDEN))).astype(jnp.float32)
    bih0 = (s * jax.random.normal(ks[2], (1, 3 * HIDDEN))).astype(jnp.float32)
    bhh0 = (s * jax.random.normal(ks[3], (1, 3 * HIDDEN))).astype(jnp.float32)

    wih1 = (s * jax.random.normal(ks[4], (HIDDEN, 3 * HIDDEN))).astype(jnp.float32)
    whh1 = (s * jax.random.normal(ks[5], (HIDDEN, 3 * HIDDEN))).astype(jnp.float32)
    bih1 = (s * jax.random.normal(ks[6], (1, 3 * HIDDEN))).astype(jnp.float32)
    bhh1 = (s * jax.random.normal(ks[7], (1, 3 * HIDDEN))).astype(jnp.float32)

    wout = (s * jax.random.normal(ks[8], (HIDDEN, D_OUT))).astype(jnp.float32)
    bout = (s * jax.random.normal(ks[9], (1, D_OUT))).astype(jnp.float32)

    params = (wih0, whh0, bih0, bhh0, wih1, whh1, bih1, bhh1, wout, bout)

    rnn_input = jax.random.normal(ks[10], (T, B, D_IN), dtype=jnp.float32)

    out = jax.block_until_ready(sequence_forward(rnn_input, params, HIDDEN))
    ref = jax.block_until_ready(_reference_forward(rnn_input, params, HIDDEN))
    np.testing.assert_allclose(np.asarray(out), np.asarray(ref), rtol=1e-5, atol=1e-5)

    print("KERNEL_OK")
</pallas_src>

<mosaic_0001>
module attributes {stable_mosaic.version = 11 : i64} {
  func.func @_sequence_kernel(%arg0: memref<64x4xf32, #tpu.memory_space<vmem>>, %arg1: memref<4x96xf32, #tpu.memory_space<vmem>>, %arg2: memref<1x96xf32, #tpu.memory_space<vmem>>, %arg3: memref<32x192xf32, #tpu.memory_space<vmem>>, %arg4: memref<1x192xf32, #tpu.memory_space<vmem>>, %arg5: memref<32x99xf32, #tpu.memory_space<vmem>>, %arg6: memref<1x99xf32, #tpu.memory_space<vmem>>, %arg7: memref<8x3xf32, #tpu.memory_space<vmem>>) attributes {dimension_semantics = [], scalar_prefetch = 0 : i64, scratch_operands = 0 : i64, tpu.core_type = #tpu.core_type<tc>} {
    %c0 = arith.constant 0 : index
    %c0_0 = arith.constant 0 : index
    %0 = vector.load %arg0[%c0, %c0_0] : memref<64x4xf32, #tpu.memory_space<vmem>>, vector<64x4xf32>
    %c0_1 = arith.constant 0 : index
    %c0_2 = arith.constant 0 : index
    %1 = vector.load %arg1[%c0_1, %c0_2] : memref<4x96xf32, #tpu.memory_space<vmem>>, vector<4x96xf32>
    %cst = arith.constant dense<0.000000e+00> : vector<64x96xf32>
    %2 = tpu.matmul %0, %1, %cst {dimension_numbers = #tpu.dot_dimension_numbers<[1], [0], [0], [1], [0, 0, 1, 1], [], []>} : vector<64x4xf32>, vector<4x96xf32>, vector<64x96xf32> -> vector<64x96xf32>
    %c0_3 = arith.constant 0 : index
    %c0_4 = arith.constant 0 : index
    %3 = vector.load %arg2[%c0_3, %c0_4] : memref<1x96xf32, #tpu.memory_space<vmem>>, vector<1x96xf32>
    %4 = vector.broadcast %3 : vector<1x96xf32> to vector<64x96xf32>
    %5 = arith.addf %2, %4 : vector<64x96xf32>
    %c0_5 = arith.constant 0 : index
    %c0_6 = arith.constant 0 : index
    %6 = vector.load %arg3[%c0_5, %c0_6] : memref<32x192xf32, #tpu.memory_space<vmem>>, vector<32x192xf32>
    %c0_7 = arith.constant 0 : index
    %c0_8 = arith.constant 0 : index
    %7 = vector.load %arg5[%c0_7, %c0_8] : memref<32x99xf32, #tpu.memory_space<vmem>>, vector<32x99xf32>
    %c0_9 = arith.constant 0 : index
    %c0_10 = arith.constant 0 : index
    %8 = vector.load %arg4[%c0_9, %c0_10] : memref<1x192xf32, #tpu.memory_space<vmem>>, vector<1x192xf32>
    %9 = vector.shape_cast %8 : vector<1x192xf32> to vector<1x192xf32>
    %10 = vector.broadcast %9 : vector<1x192xf32> to vector<8x192xf32>
    %c0_11 = arith.constant 0 : index
    %c0_12 = arith.constant 0 : index
    %11 = vector.load %arg6[%c0_11, %c0_12] : memref<1x99xf32, #tpu.memory_space<vmem>>, vector<1x99xf32>
    %12 = vector.shape_cast %11 : vector<1x99xf32> to vector<1x99xf32>
    %13 = vector.broadcast %12 : vector<1x99xf32> to vector<8x99xf32>
    %cst_13 = arith.constant 0.000000e+00 : f32
    %14 = vector.broadcast %cst_13 : f32 to vector<8x32xf32>
    %cst_14 = arith.constant 0.000000e+00 : f32
    %15 = vector.broadcast %cst_14 : f32 to vector<8x32xf32>
    %16 = vector.extract_strided_slice %13 {offsets = [0, 0], sizes = [8, 96], strides = [1, 1]} : vector<8x99xf32> to vector<8x96xf32>
    %17 = vector.extract_strided_slice %5 {offsets = [0, 0], sizes = [8, 96], strides = [1, 1]} : vector<64x96xf32> to vector<8x96xf32>
    %18 = vector.extract_strided_slice %10 {offsets = [0, 0], sizes = [8, 96], strides = [1, 1]} : vector<8x192xf32> to vector<8x96xf32>
    %19 = vector.extract_strided_slice %17 {offsets = [0, 0], sizes = [8, 64], strides = [1, 1]} : vector<8x96xf32> to vector<8x64xf32>
    %20 = vector.extract_strided_slice %18 {offsets = [0, 0], sizes = [8, 64], strides = [1, 1]} : vector<8x96xf32> to vector<8x64xf32>
    %21 = arith.addf %19, %20 : vector<8x64xf32>
    %22 = arith.negf %21 : vector<8x64xf32>
    %23 = math.exp %22 : vector<8x64xf32>
    %cst_15 = arith.constant 1.000000e+00 : f32
    %24 = vector.broadcast %cst_15 : f32 to vector<8x64xf32>
    %25 = arith.addf %24, %23 : vector<8x64xf32>
    %26 = arith.divf %24, %25 : vector<8x64xf32>
    %27 = vector.extract_strided_slice %26 {offsets = [0, 0], sizes = [8, 32], strides = [1, 1]} : vector<8x64xf32> to vector<8x32xf32>
    %28 = vector.extract_strided_slice %26 {offsets = [0, 32], sizes = [8, 32], strides = [1, 1]} : vector<8x64xf32> to vector<8x32xf32>
    %29 = vector.extract_strided_slice %17 {offsets = [0, 64], sizes = [8, 32], strides = [1, 1]} : vector<8x96xf32> to vector<8x32xf32>
    %30 = vector.extract_strided_slice %18 {offsets = [0, 64], sizes = [8, 32], strides = [1, 1]} : vector<8x96xf32> to vector<8x32xf32>
    %31 = arith.mulf %27, %30 : vector<8x32xf32>
    %32 = arith.addf %29, %31 : vector<8x32xf32>
    %33 = math.tanh %32 : vector<8x32xf32>
    %cst_16 = arith.constant 1.000000e+00 : f32
    %34 = vector.broadcast %cst_16 : f32 to vector<8x32xf32>
    %35 = arith.subf %34, %28 : vector<8x32xf32>
    %36 = arith.mulf %35, %33 : vector<8x32xf32>
    %37 = arith.mulf %28, %14 : vector<8x32xf32>
    %38 = arith.addf %36, %37 : vector<8x32xf32>
    %cst_17 = arith.constant dense<0.000000e+00> : vector<8x192xf32>
    %39 = tpu.matmul %38, %6, %cst_17 {dimension_numbers = #tpu.dot_dimension_numbers<[1], [0], [0], [1], [0, 0, 1, 1], [], []>} : vector<8x32xf32>, vector<32x192xf32>, vector<8x192xf32> -> vector<8x192xf32>
    %40 = arith.addf %39, %10 : vector<8x192xf32>
    %41 = vector.extract_strided_slice %40 {offsets = [0, 0], sizes = [8, 96], strides = [1, 1]} : vector<8x192xf32> to vector<8x96xf32>
    %42 = vector.extract_strided_slice %40 {offsets = [0, 96], sizes = [8, 96], strides = [1, 1]} : vector<8x192xf32> to vector<8x96xf32>
    %43 = vector.extract_strided_slice %42 {offsets = [0, 0], sizes = [8, 64], strides = [1, 1]} : vector<8x96xf32> to vector<8x64xf32>
    %44 = vector.extract_strided_slice %16 {offsets = [0, 0], sizes = [8, 64], strides = [1, 1]} : vector<8x96xf32> to vector<8x64xf32>
    %45 = arith.addf %43, %44 : vector<8x64xf32>
    %46 = arith.negf %45 : vector<8x64xf32>
    %47 = math.exp %46 : vector<8x64xf32>
    %cst_18 = arith.constant 1.000000e+00 : f32
    %48 = vector.broadcast %cst_18 : f32 to vector<8x64xf32>
    %49 = arith.addf %48, %47 : vector<8x64xf32>
    %50 = arith.divf %48, %49 : vector<8x64xf32>
    %51 = vector.extract_strided_slice %50 {offsets = [0, 0], sizes = [8, 32], strides = [1, 1]} : vector<8x64xf32> to vector<8x32xf32>
    %52 = vector.extract_strided_slice %50 {offsets = [0, 32], sizes = [8, 32], strides = [1, 1]} : vector<8x64xf32> to vector<8x32xf32>
    %53 = vector.extract_strided_slice %42 {offsets = [0, 64], sizes = [8, 32], strides = [1, 1]} : vector<8x96xf32> to vector<8x32xf32>
    %54 = vector.extract_strided_slice %16 {offsets = [0, 64], sizes = [8, 32], strides = [1, 1]} : vector<8x96xf32> to vector<8x32xf32>
    %55 = arith.mulf %51, %54 : vector<8x32xf32>
    %56 = arith.addf %53, %55 : vector<8x32xf32>
    %57 = math.tanh %56 : vector<8x32xf32>
    %cst_19 = arith.constant 1.000000e+00 : f32
    %58 = vector.broadcast %cst_19 : f32 to vector<8x32xf32>
    %59 = arith.subf %58, %52 : vector<8x32xf32>
    %60 = arith.mulf %59, %57 : vector<8x32xf32>
    %61 = arith.mulf %52, %15 : vector<8x32xf32>
    %62 = arith.addf %60, %61 : vector<8x32xf32>
    %63 = vector.extract_strided_slice %5 {offsets = [8, 0], sizes = [8, 96], strides = [1, 1]} : vector<64x96xf32> to vector<8x96xf32>
    %64 = vector.extract_strided_slice %63 {offsets = [0, 0], sizes = [8, 64], strides = [1, 1]} : vector<8x96xf32> to vector<8x64xf32>
    %65 = vector.extract_strided_slice %41 {offsets = [0, 0], sizes = [8, 64], strides = [1, 1]} : vector<8x96xf32> to vector<8x64xf32>
    %66 = arith.addf %64, %65 : vector<8x64xf32>
    %67 = arith.negf %66 : vector<8x64xf32>
    %68 = math.exp %67 : vector<8x64xf32>
    %cst_20 = arith.constant 1.000000e+00 : f32
    %69 = vector.broadcast %cst_20 : f32 to vector<8x64xf32>
    %70 = arith.addf %69, %68 : vector<8x64xf32>
    %71 = arith.divf %69, %70 : vector<8x64xf32>
    %72 = vector.extract_strided_slice %71 {offsets = [0, 0], sizes = [8, 32], strides = [1, 1]} : vector<8x64xf32> to vector<8x32xf32>
    %73 = vector.extract_strided_slice %71 {offsets = [0, 32], sizes = [8, 32], strides = [1, 1]} : vector<8x64xf32> to vector<8x32xf32>
    %74 = vector.extract_strided_slice %63 {offsets = [0, 64], sizes = [8, 32], strides = [1, 1]} : vector<8x96xf32> to vector<8x32xf32>
    %75 = vector.extract_strided_slice %41 {offsets = [0, 64], sizes = [8, 32], strides = [1, 1]} : vector<8x96xf32> to vector<8x32xf32>
    %76 = arith.mulf %72, %75 : vector<8x32xf32>
    %77 = arith.addf %74, %76 : vector<8x32xf32>
    %78 = math.tanh %77 : vector<8x32xf32>
    %cst_21 = arith.constant 1.000000e+00 : f32
    %79 = vector.broadcast %cst_21 : f32 to vector<8x32xf32>
    %80 = arith.subf %79, %73 : vector<8x32xf32>
    %81 = arith.mulf %80, %78 : vector<8x32xf32>
    %82 = arith.mulf %73, %38 : vector<8x32xf32>
    %83 = arith.addf %81, %82 : vector<8x32xf32>
    %cst_22 = arith.constant dense<0.000000e+00> : vector<8x99xf32>
    %84 = tpu.matmul %62, %7, %cst_22 {dimension_numbers = #tpu.dot_dimension_numbers<[1], [0], [0], [1], [0, 0, 1, 1], [], []>} : vector<8x32xf32>, vector<32x99xf32>, vector<8x99xf32> -> vector<8x99xf32>
    %85 = arith.addf %84, %13 : vector<8x99xf32>
    %cst_23 = arith.constant dense<0.000000e+00> : vector<8x192xf32>
    %86 = tpu.matmul %83, %6, %cst_23 {dimension_numbers = #tpu.dot_dimension_numbers<[1], [0], [0], [1], [0, 0, 1, 1], [], []>} : vector<8x32xf32>, vector<32x192xf32>, vector<8x192xf32> -> vector<8x192xf32>
    %87 = arith.addf %86, %10 : vector<8x192xf32>
    %88 = vector.extract_strided_slice %85 {offsets = [0, 0], sizes = [8, 96], strides = [1, 1]} : vector<8x99xf32> to vector<8x96xf32>
    %89 = vector.extract_strided_slice %87 {offsets = [0, 0], sizes = [8, 96], strides = [1, 1]} : vector<8x192xf32> to vector<8x96xf32>
    %90 = vector.extract_strided_slice %87 {offsets = [0, 96], sizes = [8, 96], strides = [1, 1]} : vector<8x192xf32> to vector<8x96xf32>
    %91 = vector.extract_strided_slice %90 {offsets = [0, 0], sizes = [8, 64], strides = [1, 1]} : vector<8x96xf32> to vector<8x64xf32>
    %92 = vector.extract_strided_slice %88 {offsets = [0, 0], sizes = [8, 64], strides = [1, 1]} : vector<8x96xf32> to vector<8x64xf32>
    %93 = arith.addf %91, %92 : vector<8x64xf32>
    %94 = arith.negf %93 : vector<8x64xf32>
    %95 = math.exp %94 : vector<8x64xf32>
    %cst_24 = arith.constant 1.000000e+00 : f32
    %96 = vector.broadcast %cst_24 : f32 to vector<8x64xf32>
    %97 = arith.addf %96, %95 : vector<8x64xf32>
    %98 = arith.divf %96, %97 : vector<8x64xf32>
    %99 = vector.extract_strided_slice %98 {offsets = [0, 0], sizes = [8, 32], strides = [1, 1]} : vector<8x64xf32> to vector<8x32xf32>
    %100 = vector.extract_strided_slice %98 {offsets = [0, 32], sizes = [8, 32], strides = [1, 1]} : vector<8x64xf32> to vector<8x32xf32>
    %101 = vector.extract_strided_slice %90 {offsets = [0, 64], sizes = [8, 32], strides = [1, 1]} : vector<8x96xf32> to vector<8x32xf32>
    %102 = vector.extract_strided_slice %88 {offsets = [0, 64], sizes = [8, 32], strides = [1, 1]} : vector<8x96xf32> to vector<8x32xf32>
    %103 = arith.mulf %99, %102 : vector<8x32xf32>
    %104 = arith.addf %101, %103 : vector<8x32xf32>
    %105 = math.tanh %104 : vector<8x32xf32>
    %cst_25 = arith.constant 1.000000e+00 : f32
    %106 = vector.broadcast %cst_25 : f32 to vector<8x32xf32>
    %107 = arith.subf %106, %100 : vector<8x32xf32>
    %108 = arith.mulf %107, %105 : vector<8x32xf32>
    %109 = arith.mulf %100, %62 : vector<8x32xf32>
    %110 = arith.addf %108, %109 : vector<8x32xf32>
    %111 = vector.extract_strided_slice %5 {offsets = [16, 0], sizes = [8, 96], strides = [1, 1]} : vector<64x96xf32> to vector<8x96xf32>
    %112 = vector.extract_strided_slice %111 {offsets = [0, 0], sizes = [8, 64], strides = [1, 1]} : vector<8x96xf32> to vector<8x64xf32>
    %113 = vector.extract_strided_slice %89 {offsets = [0, 0], sizes = [8, 64], strides = [1, 1]} : vector<8x96xf32> to vector<8x64xf32>
    %114 = arith.addf %112, %113 : vector<8x64xf32>
    %115 = arith.negf %114 : vector<8x64xf32>
    %116 = math.exp %115 : vector<8x64xf32>
    %cst_26 = arith.constant 1.000000e+00 : f32
    %117 = vector.broadcast %cst_26 : f32 to vector<8x64xf32>
    %118 = arith.addf %117, %116 : vector<8x64xf32>
    %119 = arith.divf %117, %118 : vector<8x64xf32>
    %120 = vector.extract_strided_slice %119 {offsets = [0, 0], sizes = [8, 32], strides = [1, 1]} : vector<8x64xf32> to vector<8x32xf32>
    %121 = vector.extract_strided_slice %119 {offsets = [0, 32], sizes = [8, 32], strides = [1, 1]} : vector<8x64xf32> to vector<8x32xf32>
    %122 = vector.extract_strided_slice %111 {offsets = [0, 64], sizes = [8, 32], strides = [1, 1]} : vector<8x96xf32> to vector<8x32xf32>
    %123 = vector.extract_strided_slice %89 {offsets = [0, 64], sizes = [8, 32], strides = [1, 1]} : vector<8x96xf32> to vector<8x32xf32>
    %124 = arith.mulf %120, %123 : vector<8x32xf32>
    %125 = arith.addf %122, %124 : vector<8x32xf32>
    %126 = math.tanh %125 : vector<8x32xf32>
    %cst_27 = arith.constant 1.000000e+00 : f32
    %127 = vector.broadcast %cst_27 : f32 to vector<8x32xf32>
    %128 = arith.subf %127, %121 : vector<8x32xf32>
    %129 = arith.mulf %128, %126 : vector<8x32xf32>
    %130 = arith.mulf %121, %83 : vector<8x32xf32>
    %131 = arith.addf %129, %130 : vector<8x32xf32>
    %cst_28 = arith.constant dense<0.000000e+00> : vector<8x99xf32>
    %132 = tpu.matmul %110, %7, %cst_28 {dimension_numbers = #tpu.dot_dimension_numbers<[1], [0], [0], [1], [0, 0, 1, 1], [], []>} : vector<8x32xf32>, vector<32x99xf32>, vector<8x99xf32> -> vector<8x99xf32>
    %133 = arith.addf %132, %13 : vector<8x99xf32>
    %cst_29 = arith.constant dense<0.000000e+00> : vector<8x192xf32>
    %134 = tpu.matmul %131, %6, %cst_29 {dimension_numbers = #tpu.dot_dimension_numbers<[1], [0], [0], [1], [0, 0, 1, 1], [], []>} : vector<8x32xf32>, vector<32x192xf32>, vector<8x192xf32> -> vector<8x192xf32>
    %135 = arith.addf %134, %10 : vector<8x192xf32>
    %136 = vector.extract_strided_slice %133 {offsets = [0, 0], sizes = [8, 96], strides = [1, 1]} : vector<8x99xf32> to vector<8x96xf32>
    %137 = vector.extract_strided_slice %135 {offsets = [0, 0], sizes = [8, 96], strides = [1, 1]} : vector<8x192xf32> to vector<8x96xf32>
    %138 = vector.extract_strided_slice %135 {offsets = [0, 96], sizes = [8, 96], strides = [1, 1]} : vector<8x192xf32> to vector<8x96xf32>
    %139 = vector.extract_strided_slice %138 {offsets = [0, 0], sizes = [8, 64], strides = [1, 1]} : vector<8x96xf32> to vector<8x64xf32>
    %140 = vector.extract_strided_slice %136 {offsets = [0, 0], sizes = [8, 64], strides = [1, 1]} : vector<8x96xf32> to vector<8x64xf32>
    %141 = arith.addf %139, %140 : vector<8x64xf32>
    %142 = arith.negf %141 : vector<8x64xf32>
    %143 = math.exp %142 : vector<8x64xf32>
    %cst_30 = arith.constant 1.000000e+00 : f32
    %144 = vector.broadcast %cst_30 : f32 to vector<8x64xf32>
    %145 = arith.addf %144, %143 : vector<8x64xf32>
    %146 = arith.divf %144, %145 : vector<8x64xf32>
    %147 = vector.extract_strided_slice %146 {offsets = [0, 0], sizes = [8, 32], strides = [1, 1]} : vector<8x64xf32> to vector<8x32xf32>
    %148 = vector.extract_strided_slice %146 {offsets = [0, 32], sizes = [8, 32], strides = [1, 1]} : vector<8x64xf32> to vector<8x32xf32>
    %149 = vector.extract_strided_slice %138 {offsets = [0, 64], sizes = [8, 32], strides = [1, 1]} : vector<8x96xf32> to vector<8x32xf32>
    %150 = vector.extract_strided_slice %136 {offsets = [0, 64], sizes = [8, 32], strides = [1, 1]} : vector<8x96xf32> to vector<8x32xf32>
    %151 = arith.mulf %147, %150 : vector<8x32xf32>
    %152 = arith.addf %149, %151 : vector<8x32xf32>
    %153 = math.tanh %152 : vector<8x32xf32>
    %cst_31 = arith.constant 1.000000e+00 : f32
    %154 = vector.broadcast %cst_31 : f32 to vector<8x32xf32>
    %155 = arith.subf %154, %148 : vector<8x32xf32>
    %156 = arith.mulf %155, %153 : vector<8x32xf32>
    %157 = arith.mulf %148, %110 : vector<8x32xf32>
    %158 = arith.addf %156, %157 : vector<8x32xf32>
    %159 = vector.extract_strided_slice %5 {offsets = [24, 0], sizes = [8, 96], strides = [1, 1]} : vector<64x96xf32> to vector<8x96xf32>
    %160 = vector.extract_strided_slice %159 {offsets = [0, 0], sizes = [8, 64], strides = [1, 1]} : vector<8x96xf32> to vector<8x64xf32>
    %161 = vector.extract_strided_slice %137 {offsets = [0, 0], sizes = [8, 64], strides = [1, 1]} : vector<8x96xf32> to vector<8x64xf32>
    %162 = arith.addf %160, %161 : vector<8x64xf32>
    %163 = arith.negf %162 : vector<8x64xf32>
    %164 = math.exp %163 : vector<8x64xf32>
    %cst_32 = arith.constant 1.000000e+00 : f32
    %165 = vector.broadcast %cst_32 : f32 to vector<8x64xf32>
    %166 = arith.addf %165, %164 : vector<8x64xf32>
    %167 = arith.divf %165, %166 : vector<8x64xf32>
    %168 = vector.extract_strided_slice %167 {offsets = [0, 0], sizes = [8, 32], strides = [1, 1]} : vector<8x64xf32> to vector<8x32xf32>
    %169 = vector.extract_strided_slice %167 {offsets = [0, 32], sizes = [8, 32], strides = [1, 1]} : vector<8x64xf32> to vector<8x32xf32>
    %170 = vector.extract_strided_slice %159 {offsets = [0, 64], sizes = [8, 32], strides = [1, 1]} : vector<8x96xf32> to vector<8x32xf32>
    %171 = vector.extract_strided_slice %137 {offsets = [0, 64], sizes = [8, 32], strides = [1, 1]} : vector<8x96xf32> to vector<8x32xf32>
    %172 = arith.mulf %168, %171 : vector<8x32xf32>
    %173 = arith.addf %170, %172 : vector<8x32xf32>
    %174 = math.tanh %173 : vector<8x32xf32>
    %cst_33 = arith.constant 1.000000e+00 : f32
    %175 = vector.broadcast %cst_33 : f32 to vector<8x32xf32>
    %176 = arith.subf %175, %169 : vector<8x32xf32>
    %177 = arith.mulf %176, %174 : vector<8x32xf32>
    %178 = arith.mulf %169, %131 : vector<8x32xf32>
    %179 = arith.addf %177, %178 : vector<8x32xf32>
    %cst_34 = arith.constant dense<0.000000e+00> : vector<8x99xf32>
    %180 = tpu.matmul %158, %7, %cst_34 {dimension_numbers = #tpu.dot_dimension_numbers<[1], [0], [0], [1], [0, 0, 1, 1], [], []>} : vector<8x32xf32>, vector<32x99xf32>, vector<8x99xf32> -> vector<8x99xf32>
    %181 = arith.addf %180, %13 : vector<8x99xf32>
    %cst_35 = arith.constant dense<0.000000e+00> : vector<8x192xf32>
    %182 = tpu.matmul %179, %6, %cst_35 {dimension_numbers = #tpu.dot_dimension_numbers<[1], [0], [0], [1], [0, 0, 1, 1], [], []>} : vector<8x32xf32>, vector<32x192xf32>, vector<8x192xf32> -> vector<8x192xf32>
    %183 = arith.addf %182, %10 : vector<8x192xf32>
    %184 = vector.extract_strided_slice %181 {offsets = [0, 0], sizes = [8, 96], strides = [1, 1]} : vector<8x99xf32> to vector<8x96xf32>
    %185 = vector.extract_strided_slice %183 {offsets = [0, 0], sizes = [8, 96], strides = [1, 1]} : vector<8x192xf32> to vector<8x96xf32>
    %186 = vector.extract_strided_slice %183 {offsets = [0, 96], sizes = [8, 96], strides = [1, 1]} : vector<8x192xf32> to vector<8x96xf32>
    %187 = vector.extract_strided_slice %186 {offsets = [0, 0], sizes = [8, 64], strides = [1, 1]} : vector<8x96xf32> to vector<8x64xf32>
    %188 = vector.extract_strided_slice %184 {offsets = [0, 0], sizes = [8, 64], strides = [1, 1]} : vector<8x96xf32> to vector<8x64xf32>
    %189 = arith.addf %187, %188 : vector<8x64xf32>
    %190 = arith.negf %189 : vector<8x64xf32>
    %191 = math.exp %190 : vector<8x64xf32>
    %cst_36 = arith.constant 1.000000e+00 : f32
    %192 = vector.broadcast %cst_36 : f32 to vector<8x64xf32>
    %193 = arith.addf %192, %191 : vector<8x64xf32>
    %194 = arith.divf %192, %193 : vector<8x64xf32>
    %195 = vector.extract_strided_slice %194 {offsets = [0, 0], sizes = [8, 32], strides = [1, 1]} : vector<8x64xf32> to vector<8x32xf32>
    %196 = vector.extract_strided_slice %194 {offsets = [0, 32], sizes = [8, 32], strides = [1, 1]} : vector<8x64xf32> to vector<8x32xf32>
    %197 = vector.extract_strided_slice %186 {offsets = [0, 64], sizes = [8, 32], strides = [1, 1]} : vector<8x96xf32> to vector<8x32xf32>
    %198 = vector.extract_strided_slice %184 {offsets = [0, 64], sizes = [8, 32], strides = [1, 1]} : vector<8x96xf32> to vector<8x32xf32>
    %199 = arith.mulf %195, %198 : vector<8x32xf32>
    %200 = arith.addf %197, %199 : vector<8x32xf32>
    %201 = math.tanh %200 : vector<8x32xf32>
    %cst_37 = arith.constant 1.000000e+00 : f32
    %202 = vector.broadcast %cst_37 : f32 to vector<8x32xf32>
    %203 = arith.subf %202, %196 : vector<8x32xf32>
    %204 = arith.mulf %203, %201 : vector<8x32xf32>
    %205 = arith.mulf %196, %158 : vector<8x32xf32>
    %206 = arith.addf %204, %205 : vector<8x32xf32>
    %207 = vector.extract_strided_slice %5 {offsets = [32, 0], sizes = [8, 96], strides = [1, 1]} : vector<64x96xf32> to vector<8x96xf32>
    %208 = vector.extract_strided_slice %207 {offsets = [0, 0], sizes = [8, 64], strides = [1, 1]} : vector<8x96xf32> to vector<8x64xf32>
    %209 = vector.extract_strided_slice %185 {offsets = [0, 0], sizes = [8, 64], strides = [1, 1]} : vector<8x96xf32> to vector<8x64xf32>
    %210 = arith.addf %208, %209 : vector<8x64xf32>
    %211 = arith.negf %210 : vector<8x64xf32>
    %212 = math.exp %211 : vector<8x64xf32>
    %cst_38 = arith.constant 1.000000e+00 : f32
    %213 = vector.broadcast %cst_38 : f32 to vector<8x64xf32>
    %214 = arith.addf %213, %212 : vector<8x64xf32>
    %215 = arith.divf %213, %214 : vector<8x64xf32>
    %216 = vector.extract_strided_slice %215 {offsets = [0, 0], sizes = [8, 32], strides = [1, 1]} : vector<8x64xf32> to vector<8x32xf32>
    %217 = vector.extract_strided_slice %215 {offsets = [0, 32], sizes = [8, 32], strides = [1, 1]} : vector<8x64xf32> to vector<8x32xf32>
    %218 = vector.extract_strided_slice %207 {offsets = [0, 64], sizes = [8, 32], strides = [1, 1]} : vector<8x96xf32> to vector<8x32xf32>
    %219 = vector.extract_strided_slice %185 {offsets = [0, 64], sizes = [8, 32], strides = [1, 1]} : vector<8x96xf32> to vector<8x32xf32>
    %220 = arith.mulf %216, %219 : vector<8x32xf32>
    %221 = arith.addf %218, %220 : vector<8x32xf32>
    %222 = math.tanh %221 : vector<8x32xf32>
    %cst_39 = arith.constant 1.000000e+00 : f32
    %223 = vector.broadcast %cst_39 : f32 to vector<8x32xf32>
    %224 = arith.subf %223, %217 : vector<8x32xf32>
    %225 = arith.mulf %224, %222 : vector<8x32xf32>
    %226 = arith.mulf %217, %179 : vector<8x32xf32>
    %227 = arith.addf %225, %226 : vector<8x32xf32>
    %cst_40 = arith.constant dense<0.000000e+00> : vector<8x99xf32>
    %228 = tpu.matmul %206, %7, %cst_40 {dimension_numbers = #tpu.dot_dimension_numbers<[1], [0], [0], [1], [0, 0, 1, 1], [], []>} : vector<8x32xf32>, vector<32x99xf32>, vector<8x99xf32> -> vector<8x99xf32>
    %229 = arith.addf %228, %13 : vector<8x99xf32>
    %cst_41 = arith.constant dense<0.000000e+00> : vector<8x192xf32>
    %230 = tpu.matmul %227, %6, %cst_41 {dimension_numbers = #tpu.dot_dimension_numbers<[1], [0], [0], [1], [0, 0, 1, 1], [], []>} : vector<8x32xf32>, vector<32x192xf32>, vector<8x192xf32> -> vector<8x192xf32>
    %231 = arith.addf %230, %10 : vector<8x192xf32>
    %232 = vector.extract_strided_slice %229 {offsets = [0, 0], sizes = [8, 96], strides = [1, 1]} : vector<8x99xf32> to vector<8x96xf32>
    %233 = vector.extract_strided_slice %231 {offsets = [0, 0], sizes = [8, 96], strides = [1, 1]} : vector<8x192xf32> to vector<8x96xf32>
    %234 = vector.extract_strided_slice %231 {offsets = [0, 96], sizes = [8, 96], strides = [1, 1]} : vector<8x192xf32> to vector<8x96xf32>
    %235 = vector.extract_strided_slice %234 {offsets = [0, 0], sizes = [8, 64], strides = [1, 1]} : vector<8x96xf32> to vector<8x64xf32>
    %236 = vector.extract_strided_slice %232 {offsets = [0, 0], sizes = [8, 64], strides = [1, 1]} : vector<8x96xf32> to vector<8x64xf32>
    %237 = arith.addf %235, %236 : vector<8x64xf32>
    %238 = arith.negf %237 : vector<8x64xf32>
    %239 = math.exp %238 : vector<8x64xf32>
    %cst_42 = arith.constant 1.000000e+00 : f32
    %240 = vector.broadcast %cst_42 : f32 to vector<8x64xf32>
    %241 = arith.addf %240, %239 : vector<8x64xf32>
    %242 = arith.divf %240, %241 : vector<8x64xf32>
    %243 = vector.extract_strided_slice %242 {offsets = [0, 0], sizes = [8, 32], strides = [1, 1]} : vector<8x64xf32> to vector<8x32xf32>
    %244 = vector.extract_strided_slice %242 {offsets = [0, 32], sizes = [8, 32], strides = [1, 1]} : vector<8x64xf32> to vector<8x32xf32>
    %245 = vector.extract_strided_slice %234 {offsets = [0, 64], sizes = [8, 32], strides = [1, 1]} : vector<8x96xf32> to vector<8x32xf32>
    %246 = vector.extract_strided_slice %232 {offsets = [0, 64], sizes = [8, 32], strides = [1, 1]} : vector<8x96xf32> to vector<8x32xf32>
    %247 = arith.mulf %243, %246 : vector<8x32xf32>
    %248 = arith.addf %245, %247 : vector<8x32xf32>
    %249 = math.tanh %248 : vector<8x32xf32>
    %cst_43 = arith.constant 1.000000e+00 : f32
    %250 = vector.broadcast %cst_43 : f32 to vector<8x32xf32>
    %251 = arith.subf %250, %244 : vector<8x32xf32>
    %252 = arith.mulf %251, %249 : vector<8x32xf32>
    %253 = arith.mulf %244, %206 : vector<8x32xf32>
    %254 = arith.addf %252, %253 : vector<8x32xf32>
    %255 = vector.extract_strided_slice %5 {offsets = [40, 0], sizes = [8, 96], strides = [1, 1]} : vector<64x96xf32> to vector<8x96xf32>
    %256 = vector.extract_strided_slice %255 {offsets = [0, 0], sizes = [8, 64], strides = [1, 1]} : vector<8x96xf32> to vector<8x64xf32>
    %257 = vector.extract_strided_slice %233 {offsets = [0, 0], sizes = [8, 64], strides = [1, 1]} : vector<8x96xf32> to vector<8x64xf32>
    %258 = arith.addf %256, %257 : vector<8x64xf32>
    %259 = arith.negf %258 : vector<8x64xf32>
    %260 = math.exp %259 : vector<8x64xf32>
    %cst_44 = arith.constant 1.000000e+00 : f32
    %261 = vector.broadcast %cst_44 : f32 to vector<8x64xf32>
    %262 = arith.addf %261, %260 : vector<8x64xf32>
    %263 = arith.divf %261, %262 : vector<8x64xf32>
    %264 = vector.extract_strided_slice %263 {offsets = [0, 0], sizes = [8, 32], strides = [1, 1]} : vector<8x64xf32> to vector<8x32xf32>
    %265 = vector.extract_strided_slice %263 {offsets = [0, 32], sizes = [8, 32], strides = [1, 1]} : vector<8x64xf32> to vector<8x32xf32>
    %266 = vector.extract_strided_slice %255 {offsets = [0, 64], sizes = [8, 32], strides = [1, 1]} : vector<8x96xf32> to vector<8x32xf32>
    %267 = vector.extract_strided_slice %233 {offsets = [0, 64], sizes = [8, 32], strides = [1, 1]} : vector<8x96xf32> to vector<8x32xf32>
    %268 = arith.mulf %264, %267 : vector<8x32xf32>
    %269 = arith.addf %266, %268 : vector<8x32xf32>
    %270 = math.tanh %269 : vector<8x32xf32>
    %cst_45 = arith.constant 1.000000e+00 : f32
    %271 = vector.broadcast %cst_45 : f32 to vector<8x32xf32>
    %272 = arith.subf %271, %265 : vector<8x32xf32>
    %273 = arith.mulf %272, %270 : vector<8x32xf32>
    %274 = arith.mulf %265, %227 : vector<8x32xf32>
    %275 = arith.addf %273, %274 : vector<8x32xf32>
    %cst_46 = arith.constant dense<0.000000e+00> : vector<8x99xf32>
    %276 = tpu.matmul %254, %7, %cst_46 {dimension_numbers = #tpu.dot_dimension_numbers<[1], [0], [0], [1], [0, 0, 1, 1], [], []>} : vector<8x32xf32>, vector<32x99xf32>, vector<8x99xf32> -> vector<8x99xf32>
    %277 = arith.addf %276, %13 : vector<8x99xf32>
    %cst_47 = arith.constant dense<0.000000e+00> : vector<8x192xf32>
    %278 = tpu.matmul %275, %6, %cst_47 {dimension_numbers = #tpu.dot_dimension_numbers<[1], [0], [0], [1], [0, 0, 1, 1], [], []>} : vector<8x32xf32>, vector<32x192xf32>, vector<8x192xf32> -> vector<8x192xf32>
    %279 = arith.addf %278, %10 : vector<8x192xf32>
    %280 = vector.extract_strided_slice %277 {offsets = [0, 0], sizes = [8, 96], strides = [1, 1]} : vector<8x99xf32> to vector<8x96xf32>
    %281 = vector.extract_strided_slice %279 {offsets = [0, 0], sizes = [8, 96], strides = [1, 1]} : vector<8x192xf32> to vector<8x96xf32>
    %282 = vector.extract_strided_slice %279 {offsets = [0, 96], sizes = [8, 96], strides = [1, 1]} : vector<8x192xf32> to vector<8x96xf32>
    %283 = vector.extract_strided_slice %282 {offsets = [0, 0], sizes = [8, 64], strides = [1, 1]} : vector<8x96xf32> to vector<8x64xf32>
    %284 = vector.extract_strided_slice %280 {offsets = [0, 0], sizes = [8, 64], strides = [1, 1]} : vector<8x96xf32> to vector<8x64xf32>
    %285 = arith.addf %283, %284 : vector<8x64xf32>
    %286 = arith.negf %285 : vector<8x64xf32>
    %287 = math.exp %286 : vector<8x64xf32>
    %cst_48 = arith.constant 1.000000e+00 : f32
    %288 = vector.broadcast %cst_48 : f32 to vector<8x64xf32>
    %289 = arith.addf %288, %287 : vector<8x64xf32>
    %290 = arith.divf %288, %289 : vector<8x64xf32>
    %291 = vector.extract_strided_slice %290 {offsets = [0, 0], sizes = [8, 32], strides = [1, 1]} : vector<8x64xf32> to vector<8x32xf32>
    %292 = vector.extract_strided_slice %290 {offsets = [0, 32], sizes = [8, 32], strides = [1, 1]} : vector<8x64xf32> to vector<8x32xf32>
    %293 = vector.extract_strided_slice %282 {offsets = [0, 64], sizes = [8, 32], strides = [1, 1]} : vector<8x96xf32> to vector<8x32xf32>
    %294 = vector.extract_strided_slice %280 {offsets = [0, 64], sizes = [8, 32], strides = [1, 1]} : vector<8x96xf32> to vector<8x32xf32>
    %295 = arith.mulf %291, %294 : vector<8x32xf32>
    %296 = arith.addf %293, %295 : vector<8x32xf32>
    %297 = math.tanh %296 : vector<8x32xf32>
    %cst_49 = arith.constant 1.000000e+00 : f32
    %298 = vector.broadcast %cst_49 : f32 to vector<8x32xf32>
    %299 = arith.subf %298, %292 : vector<8x32xf32>
    %300 = arith.mulf %299, %297 : vector<8x32xf32>
    %301 = arith.mulf %292, %254 : vector<8x32xf32>
    %302 = arith.addf %300, %301 : vector<8x32xf32>
    %303 = vector.extract_strided_slice %5 {offsets = [48, 0], sizes = [8, 96], strides = [1, 1]} : vector<64x96xf32> to vector<8x96xf32>
    %304 = vector.extract_strided_slice %303 {offsets = [0, 0], sizes = [8, 64], strides = [1, 1]} : vector<8x96xf32> to vector<8x64xf32>
    %305 = vector.extract_strided_slice %281 {offsets = [0, 0], sizes = [8, 64], strides = [1, 1]} : vector<8x96xf32> to vector<8x64xf32>
    %306 = arith.addf %304, %305 : vector<8x64xf32>
    %307 = arith.negf %306 : vector<8x64xf32>
    %308 = math.exp %307 : vector<8x64xf32>
    %cst_50 = arith.constant 1.000000e+00 : f32
    %309 = vector.broadcast %cst_50 : f32 to vector<8x64xf32>
    %310 = arith.addf %309, %308 : vector<8x64xf32>
    %311 = arith.divf %309, %310 : vector<8x64xf32>
    %312 = vector.extract_strided_slice %311 {offsets = [0, 0], sizes = [8, 32], strides = [1, 1]} : vector<8x64xf32> to vector<8x32xf32>
    %313 = vector.extract_strided_slice %311 {offsets = [0, 32], sizes = [8, 32], strides = [1, 1]} : vector<8x64xf32> to vector<8x32xf32>
    %314 = vector.extract_strided_slice %303 {offsets = [0, 64], sizes = [8, 32], strides = [1, 1]} : vector<8x96xf32> to vector<8x32xf32>
    %315 = vector.extract_strided_slice %281 {offsets = [0, 64], sizes = [8, 32], strides = [1, 1]} : vector<8x96xf32> to vector<8x32xf32>
    %316 = arith.mulf %312, %315 : vector<8x32xf32>
    %317 = arith.addf %314, %316 : vector<8x32xf32>
    %318 = math.tanh %317 : vector<8x32xf32>
    %cst_51 = arith.constant 1.000000e+00 : f32
    %319 = vector.broadcast %cst_51 : f32 to vector<8x32xf32>
    %320 = arith.subf %319, %313 : vector<8x32xf32>
    %321 = arith.mulf %320, %318 : vector<8x32xf32>
    %322 = arith.mulf %313, %275 : vector<8x32xf32>
    %323 = arith.addf %321, %322 : vector<8x32xf32>
    %cst_52 = arith.constant dense<0.000000e+00> : vector<8x99xf32>
    %324 = tpu.matmul %302, %7, %cst_52 {dimension_numbers = #tpu.dot_dimension_numbers<[1], [0], [0], [1], [0, 0, 1, 1], [], []>} : vector<8x32xf32>, vector<32x99xf32>, vector<8x99xf32> -> vector<8x99xf32>
    %325 = arith.addf %324, %13 : vector<8x99xf32>
    %cst_53 = arith.constant dense<0.000000e+00> : vector<8x192xf32>
    %326 = tpu.matmul %323, %6, %cst_53 {dimension_numbers = #tpu.dot_dimension_numbers<[1], [0], [0], [1], [0, 0, 1, 1], [], []>} : vector<8x32xf32>, vector<32x192xf32>, vector<8x192xf32> -> vector<8x192xf32>
    %327 = arith.addf %326, %10 : vector<8x192xf32>
    %328 = vector.extract_strided_slice %325 {offsets = [0, 0], sizes = [8, 96], strides = [1, 1]} : vector<8x99xf32> to vector<8x96xf32>
    %329 = vector.extract_strided_slice %327 {offsets = [0, 0], sizes = [8, 96], strides = [1, 1]} : vector<8x192xf32> to vector<8x96xf32>
    %330 = vector.extract_strided_slice %327 {offsets = [0, 96], sizes = [8, 96], strides = [1, 1]} : vector<8x192xf32> to vector<8x96xf32>
    %331 = vector.extract_strided_slice %330 {offsets = [0, 0], sizes = [8, 64], strides = [1, 1]} : vector<8x96xf32> to vector<8x64xf32>
    %332 = vector.extract_strided_slice %328 {offsets = [0, 0], sizes = [8, 64], strides = [1, 1]} : vector<8x96xf32> to vector<8x64xf32>
    %333 = arith.addf %331, %332 : vector<8x64xf32>
    %334 = arith.negf %333 : vector<8x64xf32>
    %335 = math.exp %334 : vector<8x64xf32>
    %cst_54 = arith.constant 1.000000e+00 : f32
    %336 = vector.broadcast %cst_54 : f32 to vector<8x64xf32>
    %337 = arith.addf %336, %335 : vector<8x64xf32>
    %338 = arith.divf %336, %337 : vector<8x64xf32>
    %339 = vector.extract_strided_slice %338 {offsets = [0, 0], sizes = [8, 32], strides = [1, 1]} : vector<8x64xf32> to vector<8x32xf32>
    %340 = vector.extract_strided_slice %338 {offsets = [0, 32], sizes = [8, 32], strides = [1, 1]} : vector<8x64xf32> to vector<8x32xf32>
    %341 = vector.extract_strided_slice %330 {offsets = [0, 64], sizes = [8, 32], strides = [1, 1]} : vector<8x96xf32> to vector<8x32xf32>
    %342 = vector.extract_strided_slice %328 {offsets = [0, 64], sizes = [8, 32], strides = [1, 1]} : vector<8x96xf32> to vector<8x32xf32>
    %343 = arith.mulf %339, %342 : vector<8x32xf32>
    %344 = arith.addf %341, %343 : vector<8x32xf32>
    %345 = math.tanh %344 : vector<8x32xf32>
    %cst_55 = arith.constant 1.000000e+00 : f32
    %346 = vector.broadcast %cst_55 : f32 to vector<8x32xf32>
    %347 = arith.subf %346, %340 : vector<8x32xf32>
    %348 = arith.mulf %347, %345 : vector<8x32xf32>
    %349 = arith.mulf %340, %302 : vector<8x32xf32>
    %350 = arith.addf %348, %349 : vector<8x32xf32>
    %351 = vector.extract_strided_slice %5 {offsets = [56, 0], sizes = [8, 96], strides = [1, 1]} : vector<64x96xf32> to vector<8x96xf32>
    %352 = vector.extract_strided_slice %351 {offsets = [0, 0], sizes = [8, 64], strides = [1, 1]} : vector<8x96xf32> to vector<8x64xf32>
    %353 = vector.extract_strided_slice %329 {offsets = [0, 0], sizes = [8, 64], strides = [1, 1]} : vector<8x96xf32> to vector<8x64xf32>
    %354 = arith.addf %352, %353 : vector<8x64xf32>
    %355 = arith.negf %354 : vector<8x64xf32>
    %356 = math.exp %355 : vector<8x64xf32>
    %cst_56 = arith.constant 1.000000e+00 : f32
    %357 = vector.broadcast %cst_56 : f32 to vector<8x64xf32>
    %358 = arith.addf %357, %356 : vector<8x64xf32>
    %359 = arith.divf %357, %358 : vector<8x64xf32>
    %360 = vector.extract_strided_slice %359 {offsets = [0, 0], sizes = [8, 32], strides = [1, 1]} : vector<8x64xf32> to vector<8x32xf32>
    %361 = vector.extract_strided_slice %359 {offsets = [0, 32], sizes = [8, 32], strides = [1, 1]} : vector<8x64xf32> to vector<8x32xf32>
    %362 = vector.extract_strided_slice %351 {offsets = [0, 64], sizes = [8, 32], strides = [1, 1]} : vector<8x96xf32> to vector<8x32xf32>
    %363 = vector.extract_strided_slice %329 {offsets = [0, 64], sizes = [8, 32], strides = [1, 1]} : vector<8x96xf32> to vector<8x32xf32>
    %364 = arith.mulf %360, %363 : vector<8x32xf32>
    %365 = arith.addf %362, %364 : vector<8x32xf32>
    %366 = math.tanh %365 : vector<8x32xf32>
    %cst_57 = arith.constant 1.000000e+00 : f32
    %367 = vector.broadcast %cst_57 : f32 to vector<8x32xf32>
    %368 = arith.subf %367, %361 : vector<8x32xf32>
    %369 = arith.mulf %368, %366 : vector<8x32xf32>
    %370 = arith.mulf %361, %323 : vector<8x32xf32>
    %371 = arith.addf %369, %370 : vector<8x32xf32>
    %cst_58 = arith.constant dense<0.000000e+00> : vector<8x99xf32>
    %372 = tpu.matmul %350, %7, %cst_58 {dimension_numbers = #tpu.dot_dimension_numbers<[1], [0], [0], [1], [0, 0, 1, 1], [], []>} : vector<8x32xf32>, vector<32x99xf32>, vector<8x99xf32> -> vector<8x99xf32>
    %373 = arith.addf %372, %13 : vector<8x99xf32>
    %cst_59 = arith.constant dense<0.000000e+00> : vector<8x192xf32>
    %374 = tpu.matmul %371, %6, %cst_59 {dimension_numbers = #tpu.dot_dimension_numbers<[1], [0], [0], [1], [0, 0, 1, 1], [], []>} : vector<8x32xf32>, vector<32x192xf32>, vector<8x192xf32> -> vector<8x192xf32>
    %375 = arith.addf %374, %10 : vector<8x192xf32>
    %376 = vector.extract_strided_slice %373 {offsets = [0, 0], sizes = [8, 96], strides = [1, 1]} : vector<8x99xf32> to vector<8x96xf32>
    %377 = vector.extract_strided_slice %375 {offsets = [0, 96], sizes = [8, 96], strides = [1, 1]} : vector<8x192xf32> to vector<8x96xf32>
    %378 = vector.extract_strided_slice %377 {offsets = [0, 0], sizes = [8, 64], strides = [1, 1]} : vector<8x96xf32> to vector<8x64xf32>
    %379 = vector.extract_strided_slice %376 {offsets = [0, 0], sizes = [8, 64], strides = [1, 1]} : vector<8x96xf32> to vector<8x64xf32>
    %380 = arith.addf %378, %379 : vector<8x64xf32>
    %381 = arith.negf %380 : vector<8x64xf32>
    %382 = math.exp %381 : vector<8x64xf32>
    %cst_60 = arith.constant 1.000000e+00 : f32
    %383 = vector.broadcast %cst_60 : f32 to vector<8x64xf32>
    %384 = arith.addf %383, %382 : vector<8x64xf32>
    %385 = arith.divf %383, %384 : vector<8x64xf32>
    %386 = vector.extract_strided_slice %385 {offsets = [0, 0], sizes = [8, 32], strides = [1, 1]} : vector<8x64xf32> to vector<8x32xf32>
    %387 = vector.extract_strided_slice %385 {offsets = [0, 32], sizes = [8, 32], strides = [1, 1]} : vector<8x64xf32> to vector<8x32xf32>
    %388 = vector.extract_strided_slice %377 {offsets = [0, 64], sizes = [8, 32], strides = [1, 1]} : vector<8x96xf32> to vector<8x32xf32>
    %389 = vector.extract_strided_slice %376 {offsets = [0, 64], sizes = [8, 32], strides = [1, 1]} : vector<8x96xf32> to vector<8x32xf32>
    %390 = arith.mulf %386, %389 : vector<8x32xf32>
    %391 = arith.addf %388, %390 : vector<8x32xf32>
    %392 = math.tanh %391 : vector<8x32xf32>
    %cst_61 = arith.constant 1.000000e+00 : f32
    %393 = vector.broadcast %cst_61 : f32 to vector<8x32xf32>
    %394 = arith.subf %393, %387 : vector<8x32xf32>
    %395 = arith.mulf %394, %392 : vector<8x32xf32>
    %396 = arith.mulf %387, %350 : vector<8x32xf32>
    %397 = arith.addf %395, %396 : vector<8x32xf32>
    %cst_62 = arith.constant dense<0.000000e+00> : vector<8x99xf32>
    %398 = tpu.matmul %397, %7, %cst_62 {dimension_numbers = #tpu.dot_dimension_numbers<[1], [0], [0], [1], [0, 0, 1, 1], [], []>} : vector<8x32xf32>, vector<32x99xf32>, vector<8x99xf32> -> vector<8x99xf32>
    %399 = arith.addf %398, %13 : vector<8x99xf32>
    %400 = vector.extract_strided_slice %399 {offsets = [0, 96], sizes = [8, 3], strides = [1, 1]} : vector<8x99xf32> to vector<8x3xf32>
    %c0_63 = arith.constant 0 : index
    %c0_64 = arith.constant 0 : index
    %401 = vector.load %arg7[%c0_63, %c0_64] : memref<8x3xf32, #tpu.memory_space<vmem>>, vector<8x3xf32>
    tpu.vector_store %arg7[%c0_63, %c0_64], %400 {strides = array<i32>} : memref<8x3xf32, #tpu.memory_space<vmem>>, vector<8x3xf32>,
    return
  }
}

</mosaic_0001>

<llo_original>
// kernel: tpu_custom_call.1
$region0: #{tpu_custom_call.1}
  #allocation0 [shape = 'u32[]', space=smem, size = 0x4, offset = 0x4, fixed_abs, tag = 'smem constant byte address 0x4 - core index']
  #allocation1 [shape = 'u32[72,128]{1,0:T(1,128)}', space=vmem, size = 0x9000, scoped, tag = 'internal scratch']
  %s0 = inlined_call_operand.vmem [shape: f32[64,4], index: 0, kind: input, shape index: {}]
  %s1 = inlined_call_operand.vmem [shape: f32[4,96], index: 1, kind: input, shape index: {}]
  %s2 = inlined_call_operand.hbm [shape: f32[1,96], index: 2, kind: input, shape index: {}]
  %s3 = inlined_call_operand.vmem [shape: f32[32,192], index: 3, kind: input, shape index: {}]
  %s4 = inlined_call_operand.vmem [shape: f32[1,192], index: 4, kind: input, shape index: {}]
  %s5 = inlined_call_operand.hbm [shape: f32[32,99], index: 5, kind: input, shape index: {}]
  %s6 = inlined_call_operand.vmem [shape: f32[1,99], index: 6, kind: input, shape index: {}]
  %s7 = inlined_call_operand.vmem [shape: f32[8,3], index: 7, kind: output, shape index: {}]
  %s8 = sld [smem:[#allocation0]]
  $region46: #{tpu_custom_call.1} parent=0
    _
  %s10 = ssub.s32 1, %s8
  %s11 = scalar_select 0, %s10, %s8
  $region1: #{tpu_custom_call.1} parent=0
    #allocation2 [shape = 'u8[512]{0}', space=vmem, size = 0x400, scoped, tag = 'input window, operand 2, single buffered']
    #allocation3 [shape = 's32[1]{0}', space=sflag, size = 0x4, scoped, tag = 'scoped memory for tpu_custom_call.1']
    #allocation4 [shape = 'u8[16384]{0}', space=vmem, size = 0x4000, scoped, tag = 'input window, operand 5, single buffered']
    #allocation5 [shape = 's32[1]{0}', space=sflag, size = 0x4, scoped, tag = 'scoped memory for tpu_custom_call.1']
    %12 = vsyncpa [#allocation3], 0
    %13 = vsyncpa [#allocation5], 0
    // Predicated region
    $region2: #{tpu_custom_call.1} parent=1 // pred_check
      _
    $region3: #{tpu_custom_call.1} parent=1 // pred_check_branch
      %15 = sbr.rel (0) target = $region5
    $region4: #{tpu_custom_call.1} parent=1 // pred_region
      _
    $region5: #{tpu_custom_call.1} parent=1 // pred_fallthru
      _
    // Predicated region
    $region6: #{tpu_custom_call.1} parent=1 // pred_check
      _
    $region7: #{tpu_custom_call.1} parent=1 // pred_check_branch
      %17 = sbr.rel (0) target = $region9
    $region8: #{tpu_custom_call.1} parent=1 // pred_region
      _
    $region9: #{tpu_custom_call.1} parent=1 // pred_fallthru
      _
    // Predicated region
    $region10: #{tpu_custom_call.1} parent=1 // pred_check
      _
    $region11: #{tpu_custom_call.1} parent=1 // pred_check_branch
      %19 = sbr.rel (0) target = $region13
    $region12: #{tpu_custom_call.1} parent=1 // pred_region
      %21 = vsyncadd [#allocation3], 0
      %s23 = sshll.u32 %s2, 4
      %s24 = int_to_ptr.hbm [resolvable:$true] %s23
      %s25 = sshll.u32 [#allocation2], 4
      %s26 = int_to_ptr.vmem [resolvable:$true] %s25
      %28 = dma.hbm_to_vmem [thread:$0]  %s24, 16, %s26, [#allocation3]
    $region13: #{tpu_custom_call.1} parent=1 // pred_fallthru
      _
    // Predicated region
    $region14: #{tpu_custom_call.1} parent=1 // pred_check
      _
    $region15: #{tpu_custom_call.1} parent=1 // pred_check_branch
      %30 = sbr.rel (0) target = $region17
    $region16: #{tpu_custom_call.1} parent=1 // pred_region
      _
    $region17: #{tpu_custom_call.1} parent=1 // pred_fallthru
      _
    // Predicated region
    $region18: #{tpu_custom_call.1} parent=1 // pred_check
      _
    $region19: #{tpu_custom_call.1} parent=1 // pred_check_branch
      %32 = sbr.rel (0) target = $region21
    $region20: #{tpu_custom_call.1} parent=1 // pred_region
      _
    $region21: #{tpu_custom_call.1} parent=1 // pred_fallthru
      _
    // Predicated region
    $region22: #{tpu_custom_call.1} parent=1 // pred_check
      _
    $region23: #{tpu_custom_call.1} parent=1 // pred_check_branch
      %34 = sbr.rel (0) target = $region25
    $region24: #{tpu_custom_call.1} parent=1 // pred_region
      %36 = vsyncadd [#allocation5], 0
      %s37 = sshll.u32 %s5, 4
      %s38 = int_to_ptr.hbm [resolvable:$true] %s37
      %s39 = sshll.u32 [#allocation4], 4
      %s40 = int_to_ptr.vmem [resolvable:$true] %s39
      %45 = dma.hbm_to_vmem [thread:$0]  %s38, 512, %s40, [#allocation5], 128, 128, 8
    $region25: #{tpu_custom_call.1} parent=1 // pred_fallthru
      _
    // Predicated region
    $region26: #{tpu_custom_call.1} parent=1 // pred_check
      _
    $region27: #{tpu_custom_call.1} parent=1 // pred_check_branch
      %47 = sbr.rel (0) target = $region29
    $region28: #{tpu_custom_call.1} parent=1 // pred_region
      _
    $region29: #{tpu_custom_call.1} parent=1 // pred_fallthru
      _
    // Predicated region
    $region30: #{tpu_custom_call.1} parent=1 // pred_check
      _
    $region31: #{tpu_custom_call.1} parent=1 // pred_check_branch
      %49 = sbr.rel (0) target = $region33
    $region32: #{tpu_custom_call.1} parent=1 // pred_region
      %51 = dma.done [#allocation3], 16
    $region33: #{tpu_custom_call.1} parent=1 // pred_fallthru
      _
    // Predicated region
    $region34: #{tpu_custom_call.1} parent=1 // pred_check
      _
    $region35: #{tpu_custom_call.1} parent=1 // pred_check_branch
      %53 = sbr.rel (0) target = $region37
    $region36: #{tpu_custom_call.1} parent=1 // pred_region
      %55 = dma.done [#allocation5], 512
    $region37: #{tpu_custom_call.1} parent=1 // pred_fallthru
      _
    %v56 = vld [vmem:[%s0] sm:$0xff]
    %v57 = vld [vmem:[%s0 + $0x8] sm:$0xff]
    %v58 = vld [vmem:[%s0 + $0x10] sm:$0xff]
    %v59 = vld [vmem:[%s0 + $0x18] sm:$0xff]
    %v60 = vld [vmem:[%s0 + $0x20] sm:$0xff]
    %v61 = vld [vmem:[%s0 + $0x28] sm:$0xff]
    %v62 = vld [vmem:[%s0 + $0x30] sm:$0xff]
    %v63 = vld [vmem:[%s0 + $0x38] sm:$0xff]
    %v64 = vld [vmem:[%s1] sm:$0xf]
    %v65 = vld [vmem:[#allocation2] sm:$0x1]
    %v67 = vperm.slane %v65, 0
    %vm69 = vcmask 31744
    %v71 = vsel %vm69, %v56, 0
    %v74 = vsel %vm69, %v57, 0
    %v77 = vsel %vm69, %v58, 0
    %v80 = vsel %vm69, %v59, 0
    %v83 = vsel %vm69, %v60, 0
    %v86 = vsel %vm69, %v61, 0
    %v89 = vsel %vm69, %v62, 0
    %v92 = vsel %vm69, %v63, 0
    %vm94 = vcmask 1043456
    %v96 = vsel %vm94, %v64, 0
    %98 = vmatpush.msra.mxu0 0.0
    %99 = vmatpush.msra.mxu0 0.0
    %100 = vmatpush.msra.mxu0 0.0
    %101 = vmatpush.msra.mxu0 0.0
    %102 = vmatpush.msra.mxu0 0.0
    %103 = vmatpush.msra.mxu0 0.0
    %104 = vmatpush.msra.mxu0 0.0
    %105 = vmatpush.msra.mxu0 0.0
    %106 = vmatpush.msra.mxu0 0.0
    %107 = vmatpush.msra.mxu0 0.0
    %108 = vmatpush.msra.mxu0 0.0
    %109 = vmatpush.msra.mxu0 0.0
    %110 = vmatpush.msra.mxu0 0.0
    %111 = vmatpush.msra.mxu0 0.0
    %112 = vmatpush.msra.mxu0 0.0
    %113 = vmatpush.msra.mxu0 %v96
    %114 = vmatmul.f32.gmra.mxu0 %v71
    %v115 = vpop.f32.mrf.mxu0
    %v116 = vadd.f32 %v67, %v115
    %117 = vmatmul.f32.gmra.mxu0 %v74
    %v118 = vpop.f32.mrf.mxu0
    %v119 = vadd.f32 %v67, %v118
    %120 = vmatmul.f32.gmra.mxu0 %v77
    %v121 = vpop.f32.mrf.mxu0
    %v122 = vadd.f32 %v67, %v121
    %123 = vmatmul.f32.gmra.mxu0 %v80
    %v124 = vpop.f32.mrf.mxu0
    %v125 = vadd.f32 %v67, %v124
    %126 = vmatmul.f32.gmra.mxu0 %v83
    %v127 = vpop.f32.mrf.mxu0
    %v128 = vadd.f32 %v67, %v127
    %129 = vmatmul.f32.gmra.mxu0 %v86
    %v130 = vpop.f32.mrf.mxu0
    %v131 = vadd.f32 %v67, %v130
    %132 = vmatmul.f32.gmra.mxu0 %v89
    %v133 = vpop.f32.mrf.mxu0
    %v134 = vadd.f32 %v67, %v133
    %135 = vmatmul.f32.gmra.mxu0 %v92
    %v136 = vpop.f32.mrf.mxu0
    %v137 = vadd.f32 %v67, %v136
    %138 = vdwg.mxu0
    %v139 = vld [vmem:[%s3] sm:$0xff]
    %v140 = vld [vmem:[%s3 + $0x8] sm:$0xff]
    %v141 = vld [vmem:[%s3 + $0x10] sm:$0xff]
    %v142 = vld [vmem:[%s3 + $0x18] sm:$0xff]
    %v143 = vld [vmem:[%s3 + $0x20] sm:$0xff]
    %v144 = vld [vmem:[%s3 + $0x28] sm:$0xff]
    %v145 = vld [vmem:[%s3 + $0x30] sm:$0xff]
    %v146 = vld [vmem:[%s3 + $0x38] sm:$0xff]
    %v147 = vld [vmem:[#allocation4] sm:$0xff]
    %v148 = vld [vmem:[#allocation4 + $0x8] sm:$0xff]
    %v149 = vld [vmem:[#allocation4 + $0x10] sm:$0xff]
    %v150 = vld [vmem:[#allocation4 + $0x18] sm:$0xff]
    %v151 = vld [vmem:[%s4] sm:$0x3]
    %v153 = vperm.slane %v151, 0
    %v154 = vperm.slane %v151, 1
    %v157 = vld [vmem:[%s6] sm:$0x1]
    %v159 = vperm.slane %v157, 0
    %v161 = vadd.f32 %v116, %v153
    %v162 = vxor.u32 %v161, 2147483648
    %v163 = vmul.f32 %v162, 1.442695
    %v164 = vpow.pop %v163
    %v165 = vadd.f32 %v164, 1.0
    %v166 = vrcp.pop %v165
    %v167 = vmul.f32 %v165, %v166
    %v168 = vsub.f32 1.0, %v167
    %v169 = vmul.f32 %v166, %v168
    %v170 = vadd.f32 %v166, %v169
    %vm171 = vweird.f32 %v165
    %vm172 = vweird.f32 %v166
    %vm173 = vmor %vm171, %vm172
    %v174 = vsel %vm173, %v166, %v170
    %v175 = vand.u32 2147483647, %v165
    %vm176 = vcmp.eq.f32.partialorder %v175, 8.507059e+37
    %v177 = vand.u32 %v165, 2147483648
    %v178 = vor.u32 1.1754944e-38, %v177
    %v179 = vsel %vm176, %v178, %v174
    %v180 = vmul.f32 1.0, %v179
    %181 = vrot.lane.b32.xlu0 %v153, 64
    %v182 = vpop.permute.xlu0 %181
    %v184 = vmul.f32 %v180, %v182
    %186 = vrot.lane.b32.xlu0 %v184, 64
    %v187 = vpop.permute.xlu0 %186
    %v189 = vadd.f32 %v116, %v187
    %v190 = vtanh.pop %v189
    %v191 = vsub.f32 1.0, %v180
    %193 = vrot.lane.b32.xlu0 %v190, 96
    %v194 = vpop.permute.xlu0 %193
    %v196 = vmul.f32 %v191, %v194
    %v197 = vmul.f32 %v180, 0.0
    %v198 = vadd.f32 %v196, %v197
    %200 = vrot.lane.b32.xlu0 %v198, 96
    %v201 = vpop.permute.xlu0 %200
    %vm202 = vcmask 261120
    %v203 = vsel %vm202, %v201, 0
    %205 = vmatpush.msra.mxu0 0.0
    %206 = vmatpush.msra.mxu0 0.0
    %207 = vmatpush.msra.mxu0 0.0
    %208 = vmatpush.msra.mxu0 0.0
    %209 = vmatpush.msra.mxu0 0.0
    %210 = vmatpush.msra.mxu0 0.0
    %211 = vmatpush.msra.mxu0 0.0
    %212 = vmatpush.msra.mxu0 0.0
    %213 = vmatpush.msra.mxu0 0.0
    %214 = vmatpush.msra.mxu0 0.0
    %215 = vmatpush.msra.mxu0 0.0
    %216 = vmatpush.msra.mxu0 0.0
    %217 = vmatpush.msra.mxu0 %v145
    %218 = vmatpush.msra.mxu0 %v143
    %219 = vmatpush.msra.mxu0 %v141
    %220 = vmatpush.msra.mxu0 %v139
    %221 = vmatmul.f32.gmra.mxu0 %v203
    %v222 = vpop.f32.mrf.mxu0
    %v223 = vadd.f32 %v153, %v222
    %224 = vdwg.mxu0
    %225 = vmatpush.msra.mxu0 0.0
    %226 = vmatpush.msra.mxu0 0.0
    %227 = vmatpush.msra.mxu0 0.0
    %228 = vmatpush.msra.mxu0 0.0
    %229 = vmatpush.msra.mxu0 0.0
    %230 = vmatpush.msra.mxu0 0.0
    %231 = vmatpush.msra.mxu0 0.0
    %232 = vmatpush.msra.mxu0 0.0
    %233 = vmatpush.msra.mxu0 0.0
    %234 = vmatpush.msra.mxu0 0.0
    %235 = vmatpush.msra.mxu0 0.0
    %236 = vmatpush.msra.mxu0 0.0
    %237 = vmatpush.msra.mxu0 %v146
    %238 = vmatpush.msra.mxu0 %v144
    %239 = vmatpush.msra.mxu0 %v142
    %240 = vmatpush.msra.mxu0 %v140
    %241 = vmatmul.f32.gmra.mxu0 %v203
    %v242 = vpop.f32.mrf.mxu0
    %v243 = vadd.f32 %v154, %v242
    %244 = vdwg.mxu0
    %245 = vrot.lane.b32.xlu0 %v159, 96
    %v246 = vpop.permute.xlu0 %245
    %v248 = vadd.f32 %v223, %v246
    %v249 = vadd.f32 %v243, %v246
    %v250 = vxor.u32 %v248, 2147483648
    %v251 = vxor.u32 %v249, 2147483648
    %v252 = vmul.f32 %v250, 1.442695
    %v253 = vpow.pop %v252
    %v254 = vmul.f32 %v251, 1.442695
    %v255 = vpow.pop %v254
    %v256 = vadd.f32 %v253, 1.0
    %v257 = vadd.f32 %v255, 1.0
    %v258 = vrcp.pop %v256
    %v259 = vmul.f32 %v256, %v258
    %v260 = vsub.f32 1.0, %v259
    %v261 = vmul.f32 %v258, %v260
    %v262 = vadd.f32 %v258, %v261
    %vm263 = vweird.f32 %v256
    %vm264 = vweird.f32 %v258
    %vm265 = vmor %vm263, %vm264
    %v266 = vsel %vm265, %v258, %v262
    %v267 = vand.u32 2147483647, %v256
    %vm268 = vcmp.eq.f32.partialorder %v267, 8.507059e+37
    %v269 = vand.u32 %v256, 2147483648
    %v270 = vor.u32 1.1754944e-38, %v269
    %v271 = vsel %vm268, %v270, %v266
    %v272 = vmul.f32 1.0, %v271
    %v273 = vrcp.pop %v257
    %v274 = vmul.f32 %v257, %v273
    %v275 = vsub.f32 1.0, %v274
    %v276 = vmul.f32 %v273, %v275
    %v277 = vadd.f32 %v273, %v276
    %vm278 = vweird.f32 %v257
    %vm279 = vweird.f32 %v273
    %vm280 = vmor %vm278, %vm279
    %v281 = vsel %vm280, %v273, %v277
    %v282 = vand.u32 2147483647, %v257
    %vm283 = vcmp.eq.f32.partialorder %v282, 8.507059e+37
    %v284 = vand.u32 %v257, 2147483648
    %v285 = vor.u32 1.1754944e-38, %v284
    %v286 = vsel %vm283, %v285, %v281
    %v287 = vmul.f32 1.0, %v286
    %288 = vrot.lane.b32.xlu0 %v159, 32
    %v289 = vpop.permute.xlu0 %288
    %v291 = vmul.f32 %v272, %v289
    %293 = vrot.lane.b32.xlu0 %v291, 64
    %v294 = vpop.permute.xlu0 %293
    %v296 = vadd.f32 %v243, %v294
    %v297 = vtanh.pop %v296
    %v298 = vsub.f32 1.0, %v287
    %300 = vrot.lane.b32.xlu0 %v297, 96
    %v301 = vpop.permute.xlu0 %300
    %v303 = vmul.f32 %v298, %v301
    %v304 = vmul.f32 %v287, 0.0
    %v305 = vadd.f32 %v303, %v304
    %v306 = vadd.f32 %v119, %v223
    %v307 = vxor.u32 %v306, 2147483648
    %v308 = vmul.f32 %v307, 1.442695
    %v309 = vpow.pop %v308
    %v310 = vadd.f32 %v309, 1.0
    %v311 = vrcp.pop %v310
    %v312 = vmul.f32 %v310, %v311
    %v313 = vsub.f32 1.0, %v312
    %v314 = vmul.f32 %v311, %v313
    %v315 = vadd.f32 %v311, %v314
    %vm316 = vweird.f32 %v310
    %vm317 = vweird.f32 %v311
    %vm318 = vmor %vm316, %vm317
    %v319 = vsel %vm318, %v311, %v315
    %v320 = vand.u32 2147483647, %v310
    %vm321 = vcmp.eq.f32.partialorder %v320, 8.507059e+37
    %v322 = vand.u32 %v310, 2147483648
    %v323 = vor.u32 1.1754944e-38, %v322
    %v324 = vsel %vm321, %v323, %v319
    %v325 = vmul.f32 1.0, %v324
    %327 = vrot.lane.b32.xlu0 %v223, 64
    %v328 = vpop.permute.xlu0 %327
    %v330 = vmul.f32 %v325, %v328
    %332 = vrot.lane.b32.xlu0 %v330, 64
    %v333 = vpop.permute.xlu0 %332
    %v335 = vadd.f32 %v119, %v333
    %v336 = vtanh.pop %v335
    %v337 = vsub.f32 1.0, %v325
    %339 = vrot.lane.b32.xlu0 %v336, 96
    %v340 = vpop.permute.xlu0 %339
    %v342 = vmul.f32 %v337, %v340
    %v343 = vmul.f32 %v325, %v198
    %v344 = vadd.f32 %v342, %v343
    %v346 = vsel %vm202, %v305, 0
    %348 = vmatpush.msra.mxu0 0.0
    %349 = vmatpush.msra.mxu0 0.0
    %350 = vmatpush.msra.mxu0 0.0
    %351 = vmatpush.msra.mxu0 0.0
    %352 = vmatpush.msra.mxu0 0.0
    %353 = vmatpush.msra.mxu0 0.0
    %354 = vmatpush.msra.mxu0 0.0
    %355 = vmatpush.msra.mxu0 0.0
    %356 = vmatpush.msra.mxu0 0.0
    %357 = vmatpush.msra.mxu0 0.0
    %358 = vmatpush.msra.mxu0 0.0
    %359 = vmatpush.msra.mxu0 0.0
    %360 = vmatpush.msra.mxu0 %v150
    %361 = vmatpush.msra.mxu0 %v149
    %362 = vmatpush.msra.mxu0 %v148
    %363 = vmatpush.msra.mxu0 %v147
    %364 = vmatmul.f32.gmra.mxu0 %v346
    %v365 = vpop.f32.mrf.mxu0
    %v366 = vadd.f32 %v159, %v365
    %367 = vdwg.mxu0
    %369 = vrot.lane.b32.xlu0 %v344, 96
    %v370 = vpop.permute.xlu0 %369
    %v371 = vsel %vm202, %v370, 0
    %373 = vmatpush.msra.mxu0 0.0
    %374 = vmatpush.msra.mxu0 0.0
    %375 = vmatpush.msra.mxu0 0.0
    %376 = vmatpush.msra.mxu0 0.0
    %377 = vmatpush.msra.mxu0 0.0
    %378 = vmatpush.msra.mxu0 0.0
    %379 = vmatpush.msra.mxu0 0.0
    %380 = vmatpush.msra.mxu0 0.0
    %381 = vmatpush.msra.mxu0 0.0
    %382 = vmatpush.msra.mxu0 0.0
    %383 = vmatpush.msra.mxu0 0.0
    %384 = vmatpush.msra.mxu0 0.0
    %385 = vmatpush.msra.mxu0 %v145
    %386 = vmatpush.msra.mxu0 %v143
    %387 = vmatpush.msra.mxu0 %v141
    %388 = vmatpush.msra.mxu0 %v139
    %389 = vmatmul.f32.gmra.mxu0 %v371
    %v390 = vpop.f32.mrf.mxu0
    %v391 = vadd.f32 %v153, %v390
    %392 = vdwg.mxu0
    %393 = vmatpush.msra.mxu0 0.0
    %394 = vmatpush.msra.mxu0 0.0
    %395 = vmatpush.msra.mxu0 0.0
    %396 = vmatpush.msra.mxu0 0.0
    %397 = vmatpush.msra.mxu0 0.0
    %398 = vmatpush.msra.mxu0 0.0
    %399 = vmatpush.msra.mxu0 0.0
    %400 = vmatpush.msra.mxu0 0.0
    %401 = vmatpush.msra.mxu0 0.0
    %402 = vmatpush.msra.mxu0 0.0
    %403 = vmatpush.msra.mxu0 0.0
    %404 = vmatpush.msra.mxu0 0.0
    %405 = vmatpush.msra.mxu0 %v146
    %406 = vmatpush.msra.mxu0 %v144
    %407 = vmatpush.msra.mxu0 %v142
    %408 = vmatpush.msra.mxu0 %v140
    %409 = vmatmul.f32.gmra.mxu0 %v371
    %v410 = vpop.f32.mrf.mxu0
    %v411 = vadd.f32 %v154, %v410
    %412 = vdwg.mxu0
    %414 = vrot.lane.b32.xlu0 %v366, 96
    %v415 = vpop.permute.xlu0 %414
    %v417 = vadd.f32 %v391, %v415
    %v418 = vadd.f32 %v411, %v415
    %v419 = vxor.u32 %v417, 2147483648
    %v420 = vxor.u32 %v418, 2147483648
    %v421 = vmul.f32 %v419, 1.442695
    %v422 = vpow.pop %v421
    %v423 = vmul.f32 %v420, 1.442695
    %v424 = vpow.pop %v423
    %v425 = vadd.f32 %v422, 1.0
    %v426 = vadd.f32 %v424, 1.0
    %v427 = vrcp.pop %v425
    %v428 = vmul.f32 %v425, %v427
    %v429 = vsub.f32 1.0, %v428
    %v430 = vmul.f32 %v427, %v429
    %v431 = vadd.f32 %v427, %v430
    %vm432 = vweird.f32 %v425
    %vm433 = vweird.f32 %v427
    %vm434 = vmor %vm432, %vm433
    %v435 = vsel %vm434, %v427, %v431
    %v436 = vand.u32 2147483647, %v425
    %vm437 = vcmp.eq.f32.partialorder %v436, 8.507059e+37
    %v438 = vand.u32 %v425, 2147483648
    %v439 = vor.u32 1.1754944e-38, %v438
    %v440 = vsel %vm437, %v439, %v435
    %v441 = vmul.f32 1.0, %v440
    %v442 = vrcp.pop %v426
    %v443 = vmul.f32 %v426, %v442
    %v444 = vsub.f32 1.0, %v443
    %v445 = vmul.f32 %v442, %v444
    %v446 = vadd.f32 %v442, %v445
    %vm447 = vweird.f32 %v426
    %vm448 = vweird.f32 %v442
    %vm449 = vmor %vm447, %vm448
    %v450 = vsel %vm449, %v442, %v446
    %v451 = vand.u32 2147483647, %v426
    %vm452 = vcmp.eq.f32.partialorder %v451, 8.507059e+37
    %v453 = vand.u32 %v426, 2147483648
    %v454 = vor.u32 1.1754944e-38, %v453
    %v455 = vsel %vm452, %v454, %v450
    %v456 = vmul.f32 1.0, %v455
    %457 = vrot.lane.b32.xlu0 %v366, 32
    %v458 = vpop.permute.xlu0 %457
    %v460 = vmul.f32 %v441, %v458
    %462 = vrot.lane.b32.xlu0 %v460, 64
    %v463 = vpop.permute.xlu0 %462
    %v465 = vadd.f32 %v411, %v463
    %v466 = vtanh.pop %v465
    %v467 = vsub.f32 1.0, %v456
    %469 = vrot.lane.b32.xlu0 %v466, 96
    %v470 = vpop.permute.xlu0 %469
    %v472 = vmul.f32 %v467, %v470
    %v473 = vmul.f32 %v456, %v305
    %v474 = vadd.f32 %v472, %v473
    %v475 = vadd.f32 %v122, %v391
    %v476 = vxor.u32 %v475, 2147483648
    %v477 = vmul.f32 %v476, 1.442695
    %v478 = vpow.pop %v477
    %v479 = vadd.f32 %v478, 1.0
    %v480 = vrcp.pop %v479
    %v481 = vmul.f32 %v479, %v480
    %v482 = vsub.f32 1.0, %v481
    %v483 = vmul.f32 %v480, %v482
    %v484 = vadd.f32 %v480, %v483
    %vm485 = vweird.f32 %v479
    %vm486 = vweird.f32 %v480
    %vm487 = vmor %vm485, %vm486
    %v488 = vsel %vm487, %v480, %v484
    %v489 = vand.u32 2147483647, %v479
    %vm490 = vcmp.eq.f32.partialorder %v489, 8.507059e+37
    %v491 = vand.u32 %v479, 2147483648
    %v492 = vor.u32 1.1754944e-38, %v491
    %v493 = vsel %vm490, %v492, %v488
    %v494 = vmul.f32 1.0, %v493
    %496 = vrot.lane.b32.xlu0 %v391, 64
    %v497 = vpop.permute.xlu0 %496
    %v499 = vmul.f32 %v494, %v497
    %501 = vrot.lane.b32.xlu0 %v499, 64
    %v502 = vpop.permute.xlu0 %501
    %v504 = vadd.f32 %v122, %v502
    %v505 = vtanh.pop %v504
    %v506 = vsub.f32 1.0, %v494
    %508 = vrot.lane.b32.xlu0 %v505, 96
    %v509 = vpop.permute.xlu0 %508
    %v511 = vmul.f32 %v506, %v509
    %v512 = vmul.f32 %v494, %v344
    %v513 = vadd.f32 %v511, %v512
    %v515 = vsel %vm202, %v474, 0
    %517 = vmatpush.msra.mxu0 0.0
    %518 = vmatpush.msra.mxu0 0.0
    %519 = vmatpush.msra.mxu0 0.0
    %520 = vmatpush.msra.mxu0 0.0
    %521 = vmatpush.msra.mxu0 0.0
    %522 = vmatpush.msra.mxu0 0.0
    %523 = vmatpush.msra.mxu0 0.0
    %524 = vmatpush.msra.mxu0 0.0
    %525 = vmatpush.msra.mxu0 0.0
    %526 = vmatpush.msra.mxu0 0.0
    %527 = vmatpush.msra.mxu0 0.0
    %528 = vmatpush.msra.mxu0 0.0
    %529 = vmatpush.msra.mxu0 %v150
    %530 = vmatpush.msra.mxu0 %v149
    %531 = vmatpush.msra.mxu0 %v148
    %532 = vmatpush.msra.mxu0 %v147
    %533 = vmatmul.f32.gmra.mxu0 %v515
    %v534 = vpop.f32.mrf.mxu0
    %v535 = vadd.f32 %v159, %v534
    %536 = vdwg.mxu0
    %538 = vrot.lane.b32.xlu0 %v513, 96
    %v539 = vpop.permute.xlu0 %538
    %v540 = vsel %vm202, %v539, 0
    %542 = vmatpush.msra.mxu0 0.0
    %543 = vmatpush.msra.mxu0 0.0
    %544 = vmatpush.msra.mxu0 0.0
    %545 = vmatpush.msra.mxu0 0.0
    %546 = vmatpush.msra.mxu0 0.0
    %547 = vmatpush.msra.mxu0 0.0
    %548 = vmatpush.msra.mxu0 0.0
    %549 = vmatpush.msra.mxu0 0.0
    %550 = vmatpush.msra.mxu0 0.0
    %551 = vmatpush.msra.mxu0 0.0
    %552 = vmatpush.msra.mxu0 0.0
    %553 = vmatpush.msra.mxu0 0.0
    %554 = vmatpush.msra.mxu0 %v145
    %555 = vmatpush.msra.mxu0 %v143
    %556 = vmatpush.msra.mxu0 %v141
    %557 = vmatpush.msra.mxu0 %v139
    %558 = vmatmul.f32.gmra.mxu0 %v540
    %v559 = vpop.f32.mrf.mxu0
    %v560 = vadd.f32 %v153, %v559
    %561 = vdwg.mxu0
    %562 = vmatpush.msra.mxu0 0.0
    %563 = vmatpush.msra.mxu0 0.0
    %564 = vmatpush.msra.mxu0 0.0
    %565 = vmatpush.msra.mxu0 0.0
    %566 = vmatpush.msra.mxu0 0.0
    %567 = vmatpush.msra.mxu0 0.0
    %568 = vmatpush.msra.mxu0 0.0
    %569 = vmatpush.msra.mxu0 0.0
    %570 = vmatpush.msra.mxu0 0.0
    %571 = vmatpush.msra.mxu0 0.0
    %572 = vmatpush.msra.mxu0 0.0
    %573 = vmatpush.msra.mxu0 0.0
    %574 = vmatpush.msra.mxu0 %v146
    %575 = vmatpush.msra.mxu0 %v144
    %576 = vmatpush.msra.mxu0 %v142
    %577 = vmatpush.msra.mxu0 %v140
    %578 = vmatmul.f32.gmra.mxu0 %v540
    %v579 = vpop.f32.mrf.mxu0
    %v580 = vadd.f32 %v154, %v579
    %581 = vdwg.mxu0
    %583 = vrot.lane.b32.xlu0 %v535, 96
    %v584 = vpop.permute.xlu0 %583
    %v586 = vadd.f32 %v560, %v584
    %v587 = vadd.f32 %v580, %v584
    %v588 = vxor.u32 %v586, 2147483648
    %v589 = vxor.u32 %v587, 2147483648
    %v590 = vmul.f32 %v588, 1.442695
    %v591 = vpow.pop %v590
    %v592 = vmul.f32 %v589, 1.442695
    %v593 = vpow.pop %v592
    %v594 = vadd.f32 %v591, 1.0
    %v595 = vadd.f32 %v593, 1.0
    %v596 = vrcp.pop %v594
    %v597 = vmul.f32 %v594, %v596
    %v598 = vsub.f32 1.0, %v597
    %v599 = vmul.f32 %v596, %v598
    %v600 = vadd.f32 %v596, %v599
    %vm601 = vweird.f32 %v594
    %vm602 = vweird.f32 %v596
    %vm603 = vmor %vm601, %vm602
    %v604 = vsel %vm603, %v596, %v600
    %v605 = vand.u32 2147483647, %v594
    %vm606 = vcmp.eq.f32.partialorder %v605, 8.507059e+37
    %v607 = vand.u32 %v594, 2147483648
    %v608 = vor.u32 1.1754944e-38, %v607
    %v609 = vsel %vm606, %v608, %v604
    %v610 = vmul.f32 1.0, %v609
    %v611 = vrcp.pop %v595
    %v612 = vmul.f32 %v595, %v611
    %v613 = vsub.f32 1.0, %v612
    %v614 = vmul.f32 %v611, %v613
    %v615 = vadd.f32 %v611, %v614
    %vm616 = vweird.f32 %v595
    %vm617 = vweird.f32 %v611
    %vm618 = vmor %vm616, %vm617
    %v619 = vsel %vm618, %v611, %v615
    %v620 = vand.u32 2147483647, %v595
    %vm621 = vcmp.eq.f32.partialorder %v620, 8.507059e+37
    %v622 = vand.u32 %v595, 2147483648
    %v623 = vor.u32 1.1754944e-38, %v622
    %v624 = vsel %vm621, %v623, %v619
    %v625 = vmul.f32 1.0, %v624
    %626 = vrot.lane.b32.xlu0 %v535, 32
    %v627 = vpop.permute.xlu0 %626
    %v629 = vmul.f32 %v610, %v627
    %631 = vrot.lane.b32.xlu0 %v629, 64
    %v632 = vpop.permute.xlu0 %631
    %v634 = vadd.f32 %v580, %v632
    %v635 = vtanh.pop %v634
    %v636 = vsub.f32 1.0, %v625
    %638 = vrot.lane.b32.xlu0 %v635, 96
    %v639 = vpop.permute.xlu0 %638
    %v641 = vmul.f32 %v636, %v639
    %v642 = vmul.f32 %v625, %v474
    %v643 = vadd.f32 %v641, %v642
    %v644 = vadd.f32 %v125, %v560
    %v645 = vxor.u32 %v644, 2147483648
    %v646 = vmul.f32 %v645, 1.442695
    %v647 = vpow.pop %v646
    %v648 = vadd.f32 %v647, 1.0
    %v649 = vrcp.pop %v648
    %v650 = vmul.f32 %v648, %v649
    %v651 = vsub.f32 1.0, %v650
    %v652 = vmul.f32 %v649, %v651
    %v653 = vadd.f32 %v649, %v652
    %vm654 = vweird.f32 %v648
    %vm655 = vweird.f32 %v649
    %vm656 = vmor %vm654, %vm655
    %v657 = vsel %vm656, %v649, %v653
    %v658 = vand.u32 2147483647, %v648
    %vm659 = vcmp.eq.f32.partialorder %v658, 8.507059e+37
    %v660 = vand.u32 %v648, 2147483648
    %v661 = vor.u32 1.1754944e-38, %v660
    %v662 = vsel %vm659, %v661, %v657
    %v663 = vmul.f32 1.0, %v662
    %665 = vrot.lane.b32.xlu0 %v560, 64
    %v666 = vpop.permute.xlu0 %665
    %v668 = vmul.f32 %v663, %v666
    %670 = vrot.lane.b32.xlu0 %v668, 64
    %v671 = vpop.permute.xlu0 %670
    %v673 = vadd.f32 %v125, %v671
    %v674 = vtanh.pop %v673
    %v675 = vsub.f32 1.0, %v663
    %677 = vrot.lane.b32.xlu0 %v674, 96
    %v678 = vpop.permute.xlu0 %677
    %v680 = vmul.f32 %v675, %v678
    %v681 = vmul.f32 %v663, %v513
    %v682 = vadd.f32 %v680, %v681
    %v684 = vsel %vm202, %v643, 0
    %686 = vmatpush.msra.mxu0 0.0
    %687 = vmatpush.msra.mxu0 0.0
    %688 = vmatpush.msra.mxu0 0.0
    %689 = vmatpush.msra.mxu0 0.0
    %690 = vmatpush.msra.mxu0 0.0
    %691 = vmatpush.msra.mxu0 0.0
    %692 = vmatpush.msra.mxu0 0.0
    %693 = vmatpush.msra.mxu0 0.0
    %694 = vmatpush.msra.mxu0 0.0
    %695 = vmatpush.msra.mxu0 0.0
    %696 = vmatpush.msra.mxu0 0.0
    %697 = vmatpush.msra.mxu0 0.0
    %698 = vmatpush.msra.mxu0 %v150
    %699 = vmatpush.msra.mxu0 %v149
    %700 = vmatpush.msra.mxu0 %v148
    %701 = vmatpush.msra.mxu0 %v147
    %702 = vmatmul.f32.gmra.mxu0 %v684
    %v703 = vpop.f32.mrf.mxu0
    %v704 = vadd.f32 %v159, %v703
    %705 = vdwg.mxu0
    %707 = vrot.lane.b32.xlu0 %v682, 96
    %v708 = vpop.permute.xlu0 %707
    %v709 = vsel %vm202, %v708, 0
    %711 = vmatpush.msra.mxu0 0.0
    %712 = vmatpush.msra.mxu0 0.0
    %713 = vmatpush.msra.mxu0 0.0
    %714 = vmatpush.msra.mxu0 0.0
    %715 = vmatpush.msra.mxu0 0.0
    %716 = vmatpush.msra.mxu0 0.0
    %717 = vmatpush.msra.mxu0 0.0
    %718 = vmatpush.msra.mxu0 0.0
    %719 = vmatpush.msra.mxu0 0.0
    %720 = vmatpush.msra.mxu0 0.0
    %721 = vmatpush.msra.mxu0 0.0
    %722 = vmatpush.msra.mxu0 0.0
    %723 = vmatpush.msra.mxu0 %v145
    %724 = vmatpush.msra.mxu0 %v143
    %725 = vmatpush.msra.mxu0 %v141
    %726 = vmatpush.msra.mxu0 %v139
    %727 = vmatmul.f32.gmra.mxu0 %v709
    %v728 = vpop.f32.mrf.mxu0
    %v729 = vadd.f32 %v153, %v728
    %730 = vdwg.mxu0
    %731 = vmatpush.msra.mxu0 0.0
    %732 = vmatpush.msra.mxu0 0.0
    %733 = vmatpush.msra.mxu0 0.0
    %734 = vmatpush.msra.mxu0 0.0
    %735 = vmatpush.msra.mxu0 0.0
    %736 = vmatpush.msra.mxu0 0.0
    %737 = vmatpush.msra.mxu0 0.0
    %738 = vmatpush.msra.mxu0 0.0
    %739 = vmatpush.msra.mxu0 0.0
    %740 = vmatpush.msra.mxu0 0.0
    %741 = vmatpush.msra.mxu0 0.0
    %742 = vmatpush.msra.mxu0 0.0
    %743 = vmatpush.msra.mxu0 %v146
    %744 = vmatpush.msra.mxu0 %v144
    %745 = vmatpush.msra.mxu0 %v142
    %746 = vmatpush.msra.mxu0 %v140
    %747 = vmatmul.f32.gmra.mxu0 %v709
    %v748 = vpop.f32.mrf.mxu0
    %v749 = vadd.f32 %v154, %v748
    %750 = vdwg.mxu0
    %752 = vrot.lane.b32.xlu0 %v704, 96
    %v753 = vpop.permute.xlu0 %752
    %v755 = vadd.f32 %v729, %v753
    %v756 = vadd.f32 %v749, %v753
    %v757 = vxor.u32 %v755, 2147483648
    %v758 = vxor.u32 %v756, 2147483648
    %v759 = vmul.f32 %v757, 1.442695
    %v760 = vpow.pop %v759
    %v761 = vmul.f32 %v758, 1.442695
    %v762 = vpow.pop %v761
    %v763 = vadd.f32 %v760, 1.0
    %v764 = vadd.f32 %v762, 1.0
    %v765 = vrcp.pop %v763
    %v766 = vmul.f32 %v763, %v765
    %v767 = vsub.f32 1.0, %v766
    %v768 = vmul.f32 %v765, %v767
    %v769 = vadd.f32 %v765, %v768
    %vm770 = vweird.f32 %v763
    %vm771 = vweird.f32 %v765
    %vm772 = vmor %vm770, %vm771
    %v773 = vsel %vm772, %v765, %v769
    %v774 = vand.u32 2147483647, %v763
    %vm775 = vcmp.eq.f32.partialorder %v774, 8.507059e+37
    %v776 = vand.u32 %v763, 2147483648
    %v777 = vor.u32 1.1754944e-38, %v776
    %v778 = vsel %vm775, %v777, %v773
    %v779 = vmul.f32 1.0, %v778
    %v780 = vrcp.pop %v764
    %v781 = vmul.f32 %v764, %v780
    %v782 = vsub.f32 1.0, %v781
    %v783 = vmul.f32 %v780, %v782
    %v784 = vadd.f32 %v780, %v783
    %vm785 = vweird.f32 %v764
    %vm786 = vweird.f32 %v780
    %vm787 = vmor %vm785, %vm786
    %v788 = vsel %vm787, %v780, %v784
    %v789 = vand.u32 2147483647, %v764
    %vm790 = vcmp.eq.f32.partialorder %v789, 8.507059e+37
    %v791 = vand.u32 %v764, 2147483648
    %v792 = vor.u32 1.1754944e-38, %v791
    %v793 = vsel %vm790, %v792, %v788
    %v794 = vmul.f32 1.0, %v793
    %795 = vrot.lane.b32.xlu0 %v704, 32
    %v796 = vpop.permute.xlu0 %795
    %v798 = vmul.f32 %v779, %v796
    %800 = vrot.lane.b32.xlu0 %v798, 64
    %v801 = vpop.permute.xlu0 %800
    %v803 = vadd.f32 %v749, %v801
    %v804 = vtanh.pop %v803
    %v805 = vsub.f32 1.0, %v794
    %807 = vrot.lane.b32.xlu0 %v804, 96
    %v808 = vpop.permute.xlu0 %807
    %v810 = vmul.f32 %v805, %v808
    %v811 = vmul.f32 %v794, %v643
    %v812 = vadd.f32 %v810, %v811
    %v813 = vadd.f32 %v128, %v729
    %v814 = vxor.u32 %v813, 2147483648
    %v815 = vmul.f32 %v814, 1.442695
    %v816 = vpow.pop %v815
    %v817 = vadd.f32 %v816, 1.0
    %v818 = vrcp.pop %v817
    %v819 = vmul.f32 %v817, %v818
    %v820 = vsub.f32 1.0, %v819
    %v821 = vmul.f32 %v818, %v820
    %v822 = vadd.f32 %v818, %v821
    %vm823 = vweird.f32 %v817
    %vm824 = vweird.f32 %v818
    %vm825 = vmor %vm823, %vm824
    %v826 = vsel %vm825, %v818, %v822
    %v827 = vand.u32 2147483647, %v817
    %vm828 = vcmp.eq.f32.partialorder %v827, 8.507059e+37
    %v829 = vand.u32 %v817, 2147483648
    %v830 = vor.u32 1.1754944e-38, %v829
    %v831 = vsel %vm828, %v830, %v826
    %v832 = vmul.f32 1.0, %v831
    %834 = vrot.lane.b32.xlu0 %v729, 64
    %v835 = vpop.permute.xlu0 %834
    %v837 = vmul.f32 %v832, %v835
    %839 = vrot.lane.b32.xlu0 %v837, 64
    %v840 = vpop.permute.xlu0 %839
    %v842 = vadd.f32 %v128, %v840
    %v843 = vtanh.pop %v842
    %v844 = vsub.f32 1.0, %v832
    %846 = vrot.lane.b32.xlu0 %v843, 96
    %v847 = vpop.permute.xlu0 %846
    %v849 = vmul.f32 %v844, %v847
    %v850 = vmul.f32 %v832, %v682
    %v851 = vadd.f32 %v849, %v850
    %v853 = vsel %vm202, %v812, 0
    %855 = vmatpush.msra.mxu0 0.0
    %856 = vmatpush.msra.mxu0 0.0
    %857 = vmatpush.msra.mxu0 0.0
    %858 = vmatpush.msra.mxu0 0.0
    %859 = vmatpush.msra.mxu0 0.0
    %860 = vmatpush.msra.mxu0 0.0
    %861 = vmatpush.msra.mxu0 0.0
    %862 = vmatpush.msra.mxu0 0.0
    %863 = vmatpush.msra.mxu0 0.0
    %864 = vmatpush.msra.mxu0 0.0
    %865 = vmatpush.msra.mxu0 0.0
    %866 = vmatpush.msra.mxu0 0.0
    %867 = vmatpush.msra.mxu0 %v150
    %868 = vmatpush.msra.mxu0 %v149
    %869 = vmatpush.msra.mxu0 %v148
    %870 = vmatpush.msra.mxu0 %v147
    %871 = vmatmul.f32.gmra.mxu0 %v853
    %v872 = vpop.f32.mrf.mxu0
    %v873 = vadd.f32 %v159, %v872
    %874 = vdwg.mxu0
    %876 = vrot.lane.b32.xlu0 %v851, 96
    %v877 = vpop.permute.xlu0 %876
    %v878 = vsel %vm202, %v877, 0
    %880 = vmatpush.msra.mxu0 0.0
    %881 = vmatpush.msra.mxu0 0.0
    %882 = vmatpush.msra.mxu0 0.0
    %883 = vmatpush.msra.mxu0 0.0
    %884 = vmatpush.msra.mxu0 0.0
    %885 = vmatpush.msra.mxu0 0.0
    %886 = vmatpush.msra.mxu0 0.0
    %887 = vmatpush.msra.mxu0 0.0
    %888 = vmatpush.msra.mxu0 0.0
    %889 = vmatpush.msra.mxu0 0.0
    %890 = vmatpush.msra.mxu0 0.0
    %891 = vmatpush.msra.mxu0 0.0
    %892 = vmatpush.msra.mxu0 %v145
    %893 = vmatpush.msra.mxu0 %v143
    %894 = vmatpush.msra.mxu0 %v141
    %895 = vmatpush.msra.mxu0 %v139
    %896 = vmatmul.f32.gmra.mxu0 %v878
    %v897 = vpop.f32.mrf.mxu0
    %v898 = vadd.f32 %v153, %v897
    %899 = vdwg.mxu0
    %900 = vmatpush.msra.mxu0 0.0
    %901 = vmatpush.msra.mxu0 0.0
    %902 = vmatpush.msra.mxu0 0.0
    %903 = vmatpush.msra.mxu0 0.0
    %904 = vmatpush.msra.mxu0 0.0
    %905 = vmatpush.msra.mxu0 0.0
    %906 = vmatpush.msra.mxu0 0.0
    %907 = vmatpush.msra.mxu0 0.0
    %908 = vmatpush.msra.mxu0 0.0
    %909 = vmatpush.msra.mxu0 0.0
    %910 = vmatpush.msra.mxu0 0.0
    %911 = vmatpush.msra.mxu0 0.0
    %912 = vmatpush.msra.mxu0 %v146
    %913 = vmatpush.msra.mxu0 %v144
    %914 = vmatpush.msra.mxu0 %v142
    %915 = vmatpush.msra.mxu0 %v140
    %916 = vmatmul.f32.gmra.mxu0 %v878
    %v917 = vpop.f32.mrf.mxu0
    %v918 = vadd.f32 %v154, %v917
    %919 = vdwg.mxu0
    %921 = vrot.lane.b32.xlu0 %v873, 96
    %v922 = vpop.permute.xlu0 %921
    %v924 = vadd.f32 %v898, %v922
    %v925 = vadd.f32 %v918, %v922
    %v926 = vxor.u32 %v924, 2147483648
    %v927 = vxor.u32 %v925, 2147483648
    %v928 = vmul.f32 %v926, 1.442695
    %v929 = vpow.pop %v928
    %v930 = vmul.f32 %v927, 1.442695
    %v931 = vpow.pop %v930
    %v932 = vadd.f32 %v929, 1.0
    %v933 = vadd.f32 %v931, 1.0
    %v934 = vrcp.pop %v932
    %v935 = vmul.f32 %v932, %v934
    %v936 = vsub.f32 1.0, %v935
    %v937 = vmul.f32 %v934, %v936
    %v938 = vadd.f32 %v934, %v937
    %vm939 = vweird.f32 %v932
    %vm940 = vweird.f32 %v934
    %vm941 = vmor %vm939, %vm940
    %v942 = vsel %vm941, %v934, %v938
    %v943 = vand.u32 2147483647, %v932
    %vm944 = vcmp.eq.f32.partialorder %v943, 8.507059e+37
    %v945 = vand.u32 %v932, 2147483648
    %v946 = vor.u32 1.1754944e-38, %v945
    %v947 = vsel %vm944, %v946, %v942
    %v948 = vmul.f32 1.0, %v947
    %v949 = vrcp.pop %v933
    %v950 = vmul.f32 %v933, %v949
    %v951 = vsub.f32 1.0, %v950
    %v952 = vmul.f32 %v949, %v951
    %v953 = vadd.f32 %v949, %v952
    %vm954 = vweird.f32 %v933
    %vm955 = vweird.f32 %v949
    %vm956 = vmor %vm954, %vm955
    %v957 = vsel %vm956, %v949, %v953
    %v958 = vand.u32 2147483647, %v933
    %vm959 = vcmp.eq.f32.partialorder %v958, 8.507059e+37
    %v960 = vand.u32 %v933, 2147483648
    %v961 = vor.u32 1.1754944e-38, %v960
    %v962 = vsel %vm959, %v961, %v957
    %v963 = vmul.f32 1.0, %v962
    %964 = vrot.lane.b32.xlu0 %v873, 32
    %v965 = vpop.permute.xlu0 %964
    %v967 = vmul.f32 %v948, %v965
    %969 = vrot.lane.b32.xlu0 %v967, 64
    %v970 = vpop.permute.xlu0 %969
    %v972 = vadd.f32 %v918, %v970
    %v973 = vtanh.pop %v972
    %v974 = vsub.f32 1.0, %v963
    %976 = vrot.lane.b32.xlu0 %v973, 96
    %v977 = vpop.permute.xlu0 %976
    %v979 = vmul.f32 %v974, %v977
    %v980 = vmul.f32 %v963, %v812
    %v981 = vadd.f32 %v979, %v980
    %v982 = vadd.f32 %v131, %v898
    %v983 = vxor.u32 %v982, 2147483648
    %v984 = vmul.f32 %v983, 1.442695
    %v985 = vpow.pop %v984
    %v986 = vadd.f32 %v985, 1.0
    %v987 = vrcp.pop %v986
    %v988 = vmul.f32 %v986, %v987
    %v989 = vsub.f32 1.0, %v988
    %v990 = vmul.f32 %v987, %v989
    %v991 = vadd.f32 %v987, %v990
    %vm992 = vweird.f32 %v986
    %vm993 = vweird.f32 %v987
    %vm994 = vmor %vm992, %vm993
    %v995 = vsel %vm994, %v987, %v991
    %v996 = vand.u32 2147483647, %v986
    %vm997 = vcmp.eq.f32.partialorder %v996, 8.507059e+37
    %v998 = vand.u32 %v986, 2147483648
    %v999 = vor.u32 1.1754944e-38, %v998
    %v1000 = vsel %vm997, %v999, %v995
    %v1001 = vmul.f32 1.0, %v1000
    %1003 = vrot.lane.b32.xlu0 %v898, 64
    %v1004 = vpop.permute.xlu0 %1003
    %v1006 = vmul.f32 %v1001, %v1004
    %1008 = vrot.lane.b32.xlu0 %v1006, 64
    %v1009 = vpop.permute.xlu0 %1008
    %v1011 = vadd.f32 %v131, %v1009
    %v1012 = vtanh.pop %v1011
    %v1013 = vsub.f32 1.0, %v1001
    %1015 = vrot.lane.b32.xlu0 %v1012, 96
    %v1016 = vpop.permute.xlu0 %1015
    %v1018 = vmul.f32 %v1013, %v1016
    %v1019 = vmul.f32 %v1001, %v851
    %v1020 = vadd.f32 %v1018, %v1019
    %v1022 = vsel %vm202, %v981, 0
    %1024 = vmatpush.msra.mxu0 0.0
    %1025 = vmatpush.msra.mxu0 0.0
    %1026 = vmatpush.msra.mxu0 0.0
    %1027 = vmatpush.msra.mxu0 0.0
    %1028 = vmatpush.msra.mxu0 0.0
    %1029 = vmatpush.msra.mxu0 0.0
    %1030 = vmatpush.msra.mxu0 0.0
    %1031 = vmatpush.msra.mxu0 0.0
    %1032 = vmatpush.msra.mxu0 0.0
    %1033 = vmatpush.msra.mxu0 0.0
    %1034 = vmatpush.msra.mxu0 0.0
    %1035 = vmatpush.msra.mxu0 0.0
    %1036 = vmatpush.msra.mxu0 %v150
    %1037 = vmatpush.msra.mxu0 %v149
    %1038 = vmatpush.msra.mxu0 %v148
    %1039 = vmatpush.msra.mxu0 %v147
    %1040 = vmatmul.f32.gmra.mxu0 %v1022
    %v1041 = vpop.f32.mrf.mxu0
    %v1042 = vadd.f32 %v159, %v1041
    %1043 = vdwg.mxu0
    %1045 = vrot.lane.b32.xlu0 %v1020, 96
    %v1046 = vpop.permute.xlu0 %1045
    %v1047 = vsel %vm202, %v1046, 0
    %1049 = vmatpush.msra.mxu0 0.0
    %1050 = vmatpush.msra.mxu0 0.0
    %1051 = vmatpush.msra.mxu0 0.0
    %1052 = vmatpush.msra.mxu0 0.0
    %1053 = vmatpush.msra.mxu0 0.0
    %1054 = vmatpush.msra.mxu0 0.0
    %1055 = vmatpush.msra.mxu0 0.0
    %1056 = vmatpush.msra.mxu0 0.0
    %1057 = vmatpush.msra.mxu0 0.0
    %1058 = vmatpush.msra.mxu0 0.0
    %1059 = vmatpush.msra.mxu0 0.0
    %1060 = vmatpush.msra.mxu0 0.0
    %1061 = vmatpush.msra.mxu0 %v145
    %1062 = vmatpush.msra.mxu0 %v143
    %1063 = vmatpush.msra.mxu0 %v141
    %1064 = vmatpush.msra.mxu0 %v139
    %1065 = vmatmul.f32.gmra.mxu0 %v1047
    %v1066 = vpop.f32.mrf.mxu0
    %v1067 = vadd.f32 %v153, %v1066
    %1068 = vdwg.mxu0
    %1069 = vmatpush.msra.mxu0 0.0
    %1070 = vmatpush.msra.mxu0 0.0
    %1071 = vmatpush.msra.mxu0 0.0
    %1072 = vmatpush.msra.mxu0 0.0
    %1073 = vmatpush.msra.mxu0 0.0
    %1074 = vmatpush.msra.mxu0 0.0
    %1075 = vmatpush.msra.mxu0 0.0
    %1076 = vmatpush.msra.mxu0 0.0
    %1077 = vmatpush.msra.mxu0 0.0
    %1078 = vmatpush.msra.mxu0 0.0
    %1079 = vmatpush.msra.mxu0 0.0
    %1080 = vmatpush.msra.mxu0 0.0
    %1081 = vmatpush.msra.mxu0 %v146
    %1082 = vmatpush.msra.mxu0 %v144
    %1083 = vmatpush.msra.mxu0 %v142
    %1084 = vmatpush.msra.mxu0 %v140
    %1085 = vmatmul.f32.gmra.mxu0 %v1047
    %v1086 = vpop.f32.mrf.mxu0
    %v1087 = vadd.f32 %v154, %v1086
    %1088 = vdwg.mxu0
    %1090 = vrot.lane.b32.xlu0 %v1042, 96
    %v1091 = vpop.permute.xlu0 %1090
    %v1093 = vadd.f32 %v1067, %v1091
    %v1094 = vadd.f32 %v1087, %v1091
    %v1095 = vxor.u32 %v1093, 2147483648
    %v1096 = vxor.u32 %v1094, 2147483648
    %v1097 = vmul.f32 %v1095, 1.442695
    %v1098 = vpow.pop %v1097
    %v1099 = vmul.f32 %v1096, 1.442695
    %v1100 = vpow.pop %v1099
    %v1101 = vadd.f32 %v1098, 1.0
    %v1102 = vadd.f32 %v1100, 1.0
    %v1103 = vrcp.pop %v1101
    %v1104 = vmul.f32 %v1101, %v1103
    %v1105 = vsub.f32 1.0, %v1104
    %v1106 = vmul.f32 %v1103, %v1105
    %v1107 = vadd.f32 %v1103, %v1106
    %vm1108 = vweird.f32 %v1101
    %vm1109 = vweird.f32 %v1103
    %vm1110 = vmor %vm1108, %vm1109
    %v1111 = vsel %vm1110, %v1103, %v1107
    %v1112 = vand.u32 2147483647, %v1101
    %vm1113 = vcmp.eq.f32.partialorder %v1112, 8.507059e+37
    %v1114 = vand.u32 %v1101, 2147483648
    %v1115 = vor.u32 1.1754944e-38, %v1114
    %v1116 = vsel %vm1113, %v1115, %v1111
    %v1117 = vmul.f32 1.0, %v1116
    %v1118 = vrcp.pop %v1102
    %v1119 = vmul.f32 %v1102, %v1118
    %v1120 = vsub.f32 1.0, %v1119
    %v1121 = vmul.f32 %v1118, %v1120
    %v1122 = vadd.f32 %v1118, %v1121
    %vm1123 = vweird.f32 %v1102
    %vm1124 = vweird.f32 %v1118
    %vm1125 = vmor %vm1123, %vm1124
    %v1126 = vsel %vm1125, %v1118, %v1122
    %v1127 = vand.u32 2147483647, %v1102
    %vm1128 = vcmp.eq.f32.partialorder %v1127, 8.507059e+37
    %v1129 = vand.u32 %v1102, 2147483648
    %v1130 = vor.u32 1.1754944e-38, %v1129
    %v1131 = vsel %vm1128, %v1130, %v1126
    %v1132 = vmul.f32 1.0, %v1131
    %1133 = vrot.lane.b32.xlu0 %v1042, 32
    %v1134 = vpop.permute.xlu0 %1133
    %v1136 = vmul.f32 %v1117, %v1134
    %1138 = vrot.lane.b32.xlu0 %v1136, 64
    %v1139 = vpop.permute.xlu0 %1138
    %v1141 = vadd.f32 %v1087, %v1139
    %v1142 = vtanh.pop %v1141
    %v1143 = vsub.f32 1.0, %v1132
    %1145 = vrot.lane.b32.xlu0 %v1142, 96
    %v1146 = vpop.permute.xlu0 %1145
    %v1148 = vmul.f32 %v1143, %v1146
    %v1149 = vmul.f32 %v1132, %v981
    %v1150 = vadd.f32 %v1148, %v1149
    %v1151 = vadd.f32 %v134, %v1067
    %v1152 = vxor.u32 %v1151, 2147483648
    %v1153 = vmul.f32 %v1152, 1.442695
    %v1154 = vpow.pop %v1153
    %v1155 = vadd.f32 %v1154, 1.0
    %v1156 = vrcp.pop %v1155
    %v1157 = vmul.f32 %v1155, %v1156
    %v1158 = vsub.f32 1.0, %v1157
    %v1159 = vmul.f32 %v1156, %v1158
    %v1160 = vadd.f32 %v1156, %v1159
    %vm1161 = vweird.f32 %v1155
    %vm1162 = vweird.f32 %v1156
    %vm1163 = vmor %vm1161, %vm1162
    %v1164 = vsel %vm1163, %v1156, %v1160
    %v1165 = vand.u32 2147483647, %v1155
    %vm1166 = vcmp.eq.f32.partialorder %v1165, 8.507059e+37
    %v1167 = vand.u32 %v1155, 2147483648
    %v1168 = vor.u32 1.1754944e-38, %v1167
    %v1169 = vsel %vm1166, %v1168, %v1164
    %v1170 = vmul.f32 1.0, %v1169
    %1172 = vrot.lane.b32.xlu0 %v1067, 64
    %v1173 = vpop.permute.xlu0 %1172
    %v1175 = vmul.f32 %v1170, %v1173
    %1177 = vrot.lane.b32.xlu0 %v1175, 64
    %v1178 = vpop.permute.xlu0 %1177
    %v1180 = vadd.f32 %v134, %v1178
    %v1181 = vtanh.pop %v1180
    %v1182 = vsub.f32 1.0, %v1170
    %1184 = vrot.lane.b32.xlu0 %v1181, 96
    %v1185 = vpop.permute.xlu0 %1184
    %v1187 = vmul.f32 %v1182, %v1185
    %v1188 = vmul.f32 %v1170, %v1020
    %v1189 = vadd.f32 %v1187, %v1188
    %v1191 = vsel %vm202, %v1150, 0
    %1193 = vmatpush.msra.mxu0 0.0
    %1194 = vmatpush.msra.mxu0 0.0
    %1195 = vmatpush.msra.mxu0 0.0
    %1196 = vmatpush.msra.mxu0 0.0
    %1197 = vmatpush.msra.mxu0 0.0
    %1198 = vmatpush.msra.mxu0 0.0
    %1199 = vmatpush.msra.mxu0 0.0
    %1200 = vmatpush.msra.mxu0 0.0
    %1201 = vmatpush.msra.mxu0 0.0
    %1202 = vmatpush.msra.mxu0 0.0
    %1203 = vmatpush.msra.mxu0 0.0
    %1204 = vmatpush.msra.mxu0 0.0
    %1205 = vmatpush.msra.mxu0 %v150
    %1206 = vmatpush.msra.mxu0 %v149
    %1207 = vmatpush.msra.mxu0 %v148
    %1208 = vmatpush.msra.mxu0 %v147
    %1209 = vmatmul.f32.gmra.mxu0 %v1191
    %v1210 = vpop.f32.mrf.mxu0
    %v1211 = vadd.f32 %v159, %v1210
    %1212 = vdwg.mxu0
    %1214 = vrot.lane.b32.xlu0 %v1189, 96
    %v1215 = vpop.permute.xlu0 %1214
    %v1216 = vsel %vm202, %v1215, 0
    %1218 = vmatpush.msra.mxu0 0.0
    %1219 = vmatpush.msra.mxu0 0.0
    %1220 = vmatpush.msra.mxu0 0.0
    %1221 = vmatpush.msra.mxu0 0.0
    %1222 = vmatpush.msra.mxu0 0.0
    %1223 = vmatpush.msra.mxu0 0.0
    %1224 = vmatpush.msra.mxu0 0.0
    %1225 = vmatpush.msra.mxu0 0.0
    %1226 = vmatpush.msra.mxu0 0.0
    %1227 = vmatpush.msra.mxu0 0.0
    %1228 = vmatpush.msra.mxu0 0.0
    %1229 = vmatpush.msra.mxu0 0.0
    %1230 = vmatpush.msra.mxu0 %v145
    %1231 = vmatpush.msra.mxu0 %v143
    %1232 = vmatpush.msra.mxu0 %v141
    %1233 = vmatpush.msra.mxu0 %v139
    %1234 = vmatmul.f32.gmra.mxu0 %v1216
    %v1235 = vpop.f32.mrf.mxu0
    %v1236 = vadd.f32 %v153, %v1235
    %1237 = vdwg.mxu0
    %1238 = vmatpush.msra.mxu0 0.0
    %1239 = vmatpush.msra.mxu0 0.0
    %1240 = vmatpush.msra.mxu0 0.0
    %1241 = vmatpush.msra.mxu0 0.0
    %1242 = vmatpush.msra.mxu0 0.0
    %1243 = vmatpush.msra.mxu0 0.0
    %1244 = vmatpush.msra.mxu0 0.0
    %1245 = vmatpush.msra.mxu0 0.0
    %1246 = vmatpush.msra.mxu0 0.0
    %1247 = vmatpush.msra.mxu0 0.0
    %1248 = vmatpush.msra.mxu0 0.0
    %1249 = vmatpush.msra.mxu0 0.0
    %1250 = vmatpush.msra.mxu0 %v146
    %1251 = vmatpush.msra.mxu0 %v144
    %1252 = vmatpush.msra.mxu0 %v142
    %1253 = vmatpush.msra.mxu0 %v140
    %1254 = vmatmul.f32.gmra.mxu0 %v1216
    %v1255 = vpop.f32.mrf.mxu0
    %v1256 = vadd.f32 %v154, %v1255
    %1257 = vdwg.mxu0
    %1259 = vrot.lane.b32.xlu0 %v1211, 96
    %v1260 = vpop.permute.xlu0 %1259
    %v1262 = vadd.f32 %v1236, %v1260
    %v1263 = vadd.f32 %v1256, %v1260
    %v1264 = vxor.u32 %v1262, 2147483648
    %v1265 = vxor.u32 %v1263, 2147483648
    %v1266 = vmul.f32 %v1264, 1.442695
    %v1267 = vpow.pop %v1266
    %v1268 = vmul.f32 %v1265, 1.442695
    %v1269 = vpow.pop %v1268
    %v1270 = vadd.f32 %v1267, 1.0
    %v1271 = vadd.f32 %v1269, 1.0
    %v1272 = vrcp.pop %v1270
    %v1273 = vmul.f32 %v1270, %v1272
    %v1274 = vsub.f32 1.0, %v1273
    %v1275 = vmul.f32 %v1272, %v1274
    %v1276 = vadd.f32 %v1272, %v1275
    %vm1277 = vweird.f32 %v1270
    %vm1278 = vweird.f32 %v1272
    %vm1279 = vmor %vm1277, %vm1278
    %v1280 = vsel %vm1279, %v1272, %v1276
    %v1281 = vand.u32 2147483647, %v1270
    %vm1282 = vcmp.eq.f32.partialorder %v1281, 8.507059e+37
    %v1283 = vand.u32 %v1270, 2147483648
    %v1284 = vor.u32 1.1754944e-38, %v1283
    %v1285 = vsel %vm1282, %v1284, %v1280
    %v1286 = vmul.f32 1.0, %v1285
    %v1287 = vrcp.pop %v1271
    %v1288 = vmul.f32 %v1271, %v1287
    %v1289 = vsub.f32 1.0, %v1288
    %v1290 = vmul.f32 %v1287, %v1289
    %v1291 = vadd.f32 %v1287, %v1290
    %vm1292 = vweird.f32 %v1271
    %vm1293 = vweird.f32 %v1287
    %vm1294 = vmor %vm1292, %vm1293
    %v1295 = vsel %vm1294, %v1287, %v1291
    %v1296 = vand.u32 2147483647, %v1271
    %vm1297 = vcmp.eq.f32.partialorder %v1296, 8.507059e+37
    %v1298 = vand.u32 %v1271, 2147483648
    %v1299 = vor.u32 1.1754944e-38, %v1298
    %v1300 = vsel %vm1297, %v1299, %v1295
    %v1301 = vmul.f32 1.0, %v1300
    %1302 = vrot.lane.b32.xlu0 %v1211, 32
    %v1303 = vpop.permute.xlu0 %1302
    %v1305 = vmul.f32 %v1286, %v1303
    %1307 = vrot.lane.b32.xlu0 %v1305, 64
    %v1308 = vpop.permute.xlu0 %1307
    %v1310 = vadd.f32 %v1256, %v1308
    %v1311 = vtanh.pop %v1310
    %v1312 = vsub.f32 1.0, %v1301
    %1314 = vrot.lane.b32.xlu0 %v1311, 96
    %v1315 = vpop.permute.xlu0 %1314
    %v1317 = vmul.f32 %v1312, %v1315
    %v1318 = vmul.f32 %v1301, %v1150
    %v1319 = vadd.f32 %v1317, %v1318
    %v1320 = vadd.f32 %v137, %v1236
    %v1321 = vxor.u32 %v1320, 2147483648
    %v1322 = vmul.f32 %v1321, 1.442695
    %v1323 = vpow.pop %v1322
    %v1324 = vadd.f32 %v1323, 1.0
    %v1325 = vrcp.pop %v1324
    %v1326 = vmul.f32 %v1324, %v1325
    %v1327 = vsub.f32 1.0, %v1326
    %v1328 = vmul.f32 %v1325, %v1327
    %v1329 = vadd.f32 %v1325, %v1328
    %vm1330 = vweird.f32 %v1324
    %vm1331 = vweird.f32 %v1325
    %vm1332 = vmor %vm1330, %vm1331
    %v1333 = vsel %vm1332, %v1325, %v1329
    %v1334 = vand.u32 2147483647, %v1324
    %vm1335 = vcmp.eq.f32.partialorder %v1334, 8.507059e+37
    %v1336 = vand.u32 %v1324, 2147483648
    %v1337 = vor.u32 1.1754944e-38, %v1336
    %v1338 = vsel %vm1335, %v1337, %v1333
    %v1339 = vmul.f32 1.0, %v1338
    %1341 = vrot.lane.b32.xlu0 %v1236, 64
    %v1342 = vpop.permute.xlu0 %1341
    %v1344 = vmul.f32 %v1339, %v1342
    %1346 = vrot.lane.b32.xlu0 %v1344, 64
    %v1347 = vpop.permute.xlu0 %1346
    %v1349 = vadd.f32 %v137, %v1347
    %v1350 = vtanh.pop %v1349
    %v1351 = vsub.f32 1.0, %v1339
    %1353 = vrot.lane.b32.xlu0 %v1350, 96
    %v1354 = vpop.permute.xlu0 %1353
    %v1356 = vmul.f32 %v1351, %v1354
    %v1357 = vmul.f32 %v1339, %v1189
    %v1358 = vadd.f32 %v1356, %v1357
    %v1360 = vsel %vm202, %v1319, 0
    %1362 = vmatpush.msra.mxu0 0.0
    %1363 = vmatpush.msra.mxu0 0.0
    %1364 = vmatpush.msra.mxu0 0.0
    %1365 = vmatpush.msra.mxu0 0.0
    %1366 = vmatpush.msra.mxu0 0.0
    %1367 = vmatpush.msra.mxu0 0.0
    %1368 = vmatpush.msra.mxu0 0.0
    %1369 = vmatpush.msra.mxu0 0.0
    %1370 = vmatpush.msra.mxu0 0.0
    %1371 = vmatpush.msra.mxu0 0.0
    %1372 = vmatpush.msra.mxu0 0.0
    %1373 = vmatpush.msra.mxu0 0.0
    %1374 = vmatpush.msra.mxu0 %v150
    %1375 = vmatpush.msra.mxu0 %v149
    %1376 = vmatpush.msra.mxu0 %v148
    %1377 = vmatpush.msra.mxu0 %v147
    %1378 = vmatmul.f32.gmra.mxu0 %v1360
    %v1379 = vpop.f32.mrf.mxu0
    %v1380 = vadd.f32 %v159, %v1379
    %1381 = vdwg.mxu0
    %1383 = vrot.lane.b32.xlu0 %v1358, 96
    %v1384 = vpop.permute.xlu0 %1383
    %v1385 = vsel %vm202, %v1384, 0
    %1387 = vmatpush.msra.mxu0 0.0
    %1388 = vmatpush.msra.mxu0 0.0
    %1389 = vmatpush.msra.mxu0 0.0
    %1390 = vmatpush.msra.mxu0 0.0
    %1391 = vmatpush.msra.mxu0 0.0
    %1392 = vmatpush.msra.mxu0 0.0
    %1393 = vmatpush.msra.mxu0 0.0
    %1394 = vmatpush.msra.mxu0 0.0
    %1395 = vmatpush.msra.mxu0 0.0
    %1396 = vmatpush.msra.mxu0 0.0
    %1397 = vmatpush.msra.mxu0 0.0
    %1398 = vmatpush.msra.mxu0 0.0
    %1399 = vmatpush.msra.mxu0 %v145
    %1400 = vmatpush.msra.mxu0 %v143
    %1401 = vmatpush.msra.mxu0 %v141
    %1402 = vmatpush.msra.mxu0 %v139
    %1403 = vmatmul.f32.gmra.mxu0 %v1385
    %v1404 = vpop.f32.mrf.mxu0
    %v1405 = vadd.f32 %v153, %v1404
    %1406 = vdwg.mxu0
    %1407 = vmatpush.msra.mxu0 0.0
    %1408 = vmatpush.msra.mxu0 0.0
    %1409 = vmatpush.msra.mxu0 0.0
    %1410 = vmatpush.msra.mxu0 0.0
    %1411 = vmatpush.msra.mxu0 0.0
    %1412 = vmatpush.msra.mxu0 0.0
    %1413 = vmatpush.msra.mxu0 0.0
    %1414 = vmatpush.msra.mxu0 0.0
    %1415 = vmatpush.msra.mxu0 0.0
    %1416 = vmatpush.msra.mxu0 0.0
    %1417 = vmatpush.msra.mxu0 0.0
    %1418 = vmatpush.msra.mxu0 0.0
    %1419 = vmatpush.msra.mxu0 %v146
    %1420 = vmatpush.msra.mxu0 %v144
    %1421 = vmatpush.msra.mxu0 %v142
    %1422 = vmatpush.msra.mxu0 %v140
    %1423 = vmatmul.f32.gmra.mxu0 %v1385
    %v1424 = vpop.f32.mrf.mxu0
    %v1425 = vadd.f32 %v154, %v1424
    %1426 = vdwg.mxu0
    %1428 = vrot.lane.b32.xlu0 %v1380, 96
    %v1429 = vpop.permute.xlu0 %1428
    %v1431 = vadd.f32 %v1405, %v1429
    %v1432 = vadd.f32 %v1425, %v1429
    %v1433 = vxor.u32 %v1431, 2147483648
    %v1434 = vxor.u32 %v1432, 2147483648
    %v1435 = vmul.f32 %v1433, 1.442695
    %v1436 = vpow.pop %v1435
    %v1437 = vmul.f32 %v1434, 1.442695
    %v1438 = vpow.pop %v1437
    %v1439 = vadd.f32 %v1436, 1.0
    %v1440 = vadd.f32 %v1438, 1.0
    %v1441 = vrcp.pop %v1439
    %v1442 = vmul.f32 %v1439, %v1441
    %v1443 = vsub.f32 1.0, %v1442
    %v1444 = vmul.f32 %v1441, %v1443
    %v1445 = vadd.f32 %v1441, %v1444
    %vm1446 = vweird.f32 %v1439
    %vm1447 = vweird.f32 %v1441
    %vm1448 = vmor %vm1446, %vm1447
    %v1449 = vsel %vm1448, %v1441, %v1445
    %v1450 = vand.u32 2147483647, %v1439
    %vm1451 = vcmp.eq.f32.partialorder %v1450, 8.507059e+37
    %v1452 = vand.u32 %v1439, 2147483648
    %v1453 = vor.u32 1.1754944e-38, %v1452
    %v1454 = vsel %vm1451, %v1453, %v1449
    %v1455 = vmul.f32 1.0, %v1454
    %v1456 = vrcp.pop %v1440
    %v1457 = vmul.f32 %v1440, %v1456
    %v1458 = vsub.f32 1.0, %v1457
    %v1459 = vmul.f32 %v1456, %v1458
    %v1460 = vadd.f32 %v1456, %v1459
    %vm1461 = vweird.f32 %v1440
    %vm1462 = vweird.f32 %v1456
    %vm1463 = vmor %vm1461, %vm1462
    %v1464 = vsel %vm1463, %v1456, %v1460
    %v1465 = vand.u32 2147483647, %v1440
    %vm1466 = vcmp.eq.f32.partialorder %v1465, 8.507059e+37
    %v1467 = vand.u32 %v1440, 2147483648
    %v1468 = vor.u32 1.1754944e-38, %v1467
    %v1469 = vsel %vm1466, %v1468, %v1464
    %v1470 = vmul.f32 1.0, %v1469
    %1471 = vrot.lane.b32.xlu0 %v1380, 32
    %v1472 = vpop.permute.xlu0 %1471
    %v1474 = vmul.f32 %v1455, %v1472
    %1476 = vrot.lane.b32.xlu0 %v1474, 64
    %v1477 = vpop.permute.xlu0 %1476
    %v1479 = vadd.f32 %v1425, %v1477
    %v1480 = vtanh.pop %v1479
    %v1481 = vsub.f32 1.0, %v1470
    %1483 = vrot.lane.b32.xlu0 %v1480, 96
    %v1484 = vpop.permute.xlu0 %1483
    %v1486 = vmul.f32 %v1481, %v1484
    %v1487 = vmul.f32 %v1470, %v1319
    %v1488 = vadd.f32 %v1486, %v1487
    %v1490 = vsel %vm202, %v1488, 0
    %1492 = vmatpush.msra.mxu0 0.0
    %1493 = vmatpush.msra.mxu0 0.0
    %1494 = vmatpush.msra.mxu0 0.0
    %1495 = vmatpush.msra.mxu0 0.0
    %1496 = vmatpush.msra.mxu0 0.0
    %1497 = vmatpush.msra.mxu0 0.0
    %1498 = vmatpush.msra.mxu0 0.0
    %1499 = vmatpush.msra.mxu0 0.0
    %1500 = vmatpush.msra.mxu0 0.0
    %1501 = vmatpush.msra.mxu0 0.0
    %1502 = vmatpush.msra.mxu0 0.0
    %1503 = vmatpush.msra.mxu0 0.0
    %1504 = vmatpush.msra.mxu0 %v150
    %1505 = vmatpush.msra.mxu0 %v149
    %1506 = vmatpush.msra.mxu0 %v148
    %1507 = vmatpush.msra.mxu0 %v147
    %1508 = vmatmul.f32.gmra.mxu0 %v1490
    %v1509 = vpop.f32.mrf.mxu0
    %v1510 = vadd.f32 %v159, %v1509
    %1511 = vdwg.mxu0
    %1513 = vrot.lane.b32.xlu0 %v1510, 32
    %v1514 = vpop.permute.xlu0 %1513
    %vm1516 = vcmask 23552
    %1517 = vst.msk [vmem:[%s7] sm:$0xff] %vm1516, %v1514
    // Predicated region
    $region38: #{tpu_custom_call.1} parent=1 // pred_check
      _
    $region39: #{tpu_custom_call.1} parent=1 // pred_check_branch
      %1519 = sbr.rel (0) target = $region41
    $region40: #{tpu_custom_call.1} parent=1 // pred_region
      _
    $region41: #{tpu_custom_call.1} parent=1 // pred_fallthru
      _
    // Predicated region
    $region42: #{tpu_custom_call.1} parent=1 // pred_check
      _
    $region43: #{tpu_custom_call.1} parent=1 // pred_check_branch
      %1521 = sbr.rel (0) target = $region45
    $region44: #{tpu_custom_call.1} parent=1 // pred_region
      _
    $region45: #{tpu_custom_call.1} parent=1 // pred_fallthru
      _
    %1522 = vsyncpa [#allocation3], 1
    %1523 = vsyncpa [#allocation5], 1

</llo_original>
